<compile_context>
chip_gen: v7x
topology: tpu7x:2x2x1
jax: 0.10.0
libtpu: 0.0.40
codegen_flags: <defaults>
</compile_context>

<pallas_src>
import functools

import jax
import jax.numpy as jnp
from jax import lax
from jax.experimental import pallas as pl
from jax.experimental.pallas import tpu as pltpu


def _round_up(x, m):
    return ((x + m - 1) // m) * m


def _itemsize(dtype):
    return jnp.zeros((), dtype).dtype.itemsize


def _vmem_capacity_bytes():
    try:
        return int(pltpu.get_tpu_info().vmem_capacity_bytes)
    except Exception:
        return 64 << 20                      # conservative (v7x per-TC VMEM)


def _graph_learner_kernel(c_tile_ref, c_all_ref, g_ref, out_ref, *,
                          inv_num_pers, epsilon, graph_skip_conn,
                          approx_row_recip):
    # attention tile = mean_p cos(f_i*w_p, f_j*w_p) = (1/P) * C_tile @ C_all^T
    nt = (((1,), (1,)), ((), ()))            # contract last dims (A @ B.T, MXU)
    att = lax.dot_general(c_tile_ref[...], c_all_ref[...], nt,
                          preferred_element_type=jnp.float32) * inv_num_pers
    if epsilon is not None:                  # epsilon neighbourhood, maskoff=0
        att = jnp.where(att > epsilon, att, 0.0)
    row_sum = jnp.sum(att, axis=-1, keepdims=True)
    inv_row = pl.reciprocal(jnp.maximum(row_sum, 1e-12), approx=approx_row_recip)
    learned = att * inv_row                  # row-normalized graph
    out_ref[...] = (graph_skip_conn * g_ref[...].astype(jnp.float32)
                    + (1.0 - graph_skip_conn) * learned).astype(out_ref.dtype)


def graph_learner_forward(feature, init_graph, weight_tensor,
                          epsilon=0.1, graph_skip_conn=0.3, *,
                          block_rows=512,
                          matmul_dtype=jnp.bfloat16,     # jnp.float32 for exactness
                          init_graph_dtype=jnp.bfloat16,
                          out_dtype=jnp.float32,         # bf16 halves the HBM write
                          approx_row_recip=False):
    n, d = feature.shape
    num_pers = weight_tensor.shape[0]

    feature = feature.astype(jnp.float32)
    weight_tensor = weight_tensor.astype(jnp.float32)

    # --- hoisted per-perspective weighting + L2 normalization (one-time XLA
    # cost; removes all per-grid-step VPU re-weighting of the resident RHS) ---
    ctx = feature[None, :, :] * weight_tensor[:, None, :]          # (P, N, D)
    sq = jnp.sum(ctx * ctx, axis=-1, keepdims=True)
    ctx_n = ctx * lax.rsqrt(jnp.maximum(sq, 1e-24))                # F.normalize
    c = jnp.transpose(ctx_n, (1, 0, 2)).reshape(n, num_pers * d)   # (N, P*D)

    pd = num_pers * d
    pd_pad = _round_up(max(pd, 1), 128)      # lane-dense contraction dim
    n_lane = _round_up(max(n, 1), 128)

    mm_isz = _itemsize(matmul_dtype)
    g_isz = _itemsize(init_graph_dtype)
    o_isz = _itemsize(out_dtype)

    # --- generation-aware VMEM budget -> row-tile size -----------------------
    budget = int(_vmem_capacity_bytes() * 0.8)   # ~102MiB v5e/v6e, ~51MiB v7x
    resident = 2 * n_lane * pd_pad * mm_isz      # RHS (worst case: double-buffered)
    per_row = (n_lane * (2 * o_isz + 2 * g_isz + 4 * 4)   # out, init_graph, temps
               + 2 * pd_pad * mm_isz)                     # LHS row tile
    tm_budget = max(((budget - resident - (2 << 20)) // per_row) // 128 * 128, 128)
    # TODO(synk): if even TM=128 rows overflow the budget (huge N on v7x),
    # column-tile the RHS/output with an 'arbitrary' grid axis + pl.when epilogue.
    tm = min(_round_up(block_rows, 128), tm_budget, n_lane)
    if n_lane >= 256:                        # >= 2 row tiles: megacore / v7x dual-TC
        tm = min(tm, _round_up(n_lane // 2, 128))
    n_pad = _round_up(n_lane, tm)

    c_pad = jnp.pad(c, ((0, n_pad - n), (0, pd_pad - pd))).astype(matmul_dtype)
    g_pad = jnp.pad(init_graph.astype(jnp.float32),
                    ((0, n_pad - n), (0, n_pad - n))).astype(init_graph_dtype)

    kernel = functools.partial(
        _graph_learner_kernel,
        inv_num_pers=1.0 / float(num_pers),
        epsilon=None if epsilon is None else float(epsilon),
        graph_skip_conn=float(graph_skip_conn),
        approx_row_recip=bool(approx_row_recip))

    vmem_limit = int(max(budget, 32 << 20))

    def _run(single_buffer_resident):
        if single_buffer_resident:
            c_all_spec = pl.BlockSpec((n_pad, pd_pad), lambda i: (0, 0),
                                      pipeline_mode=pl.Buffered(1))
        else:
            c_all_spec = pl.BlockSpec((n_pad, pd_pad), lambda i: (0, 0))
        return pl.pallas_call(
            kernel,
            out_shape=jax.ShapeDtypeStruct((n_pad, n_pad), out_dtype),
            grid=(n_pad // tm,),
            in_specs=[
                pl.BlockSpec((tm, pd_pad), lambda i: (i, 0)),   # C row tile (LHS)
                c_all_spec,                                     # C all rows (resident RHS)
                pl.BlockSpec((tm, n_pad), lambda i: (i, 0)),    # init_graph row tile
            ],
            out_specs=pl.BlockSpec((tm, n_pad), lambda i: (i, 0)),
            compiler_params=pltpu.CompilerParams(
                dimension_semantics=("parallel",),              # row tiles independent
                vmem_limit_bytes=vmem_limit),
        )(c_pad, c_pad, g_pad)

    try:
        out = _run(True)          # single-buffer the constant resident RHS
    except Exception:
        out = _run(False)         # fallback if pipeline_mode=Buffered(1) unsupported

    return out[:n, :n]


def _reference_forward(feature, init_graph, weight_tensor, epsilon, skip,
                       matmul_dtype=jnp.bfloat16):
    # Plain-JAX mirror of the PyTorch module (same bf16 Gram-matmul precision
    # as the kernel so the comparison isolates kernel mechanics).
    ctx = feature[None, :, :] * weight_tensor[:, None, :]          # (P, N, D)
    sq = jnp.sum(ctx * ctx, axis=-1, keepdims=True)
    ctx_n = (ctx * lax.rsqrt(jnp.maximum(sq, 1e-24))).astype(matmul_dtype)
    att = jnp.einsum("pnd,pmd->pnm", ctx_n, ctx_n,
                     preferred_element_type=jnp.float32)
    att = jnp.mean(att, axis=0)
    if epsilon is not None:
        att = jnp.where(att > epsilon, att, 0.0)
    learned = att / jnp.maximum(jnp.sum(att, axis=-1, keepdims=True), 1e-12)
    return skip * init_graph + (1.0 - skip) * learned


if __name__ == "__main__":
    key = jax.random.PRNGKey(0)
    k1, k2, k3 = jax.random.split(key, 3)

    N, D, P = 256, 32, 4          # nodes, hidden, num_pers  (P*D = 128 lanes)
    EPS, SKIP = 0.1, 0.3

    feature = jax.random.normal(k1, (N, D), dtype=jnp.float32)

    # deterministic xavier-uniform-like init for weight_tensor (P, D)
    limit = (6.0 / (P + D)) ** 0.5
    weight_tensor = jax.random.uniform(k2, (P, D), dtype=jnp.float32,
                                       minval=-limit, maxval=limit)

    # deterministic row-stochastic init_graph
    raw = jax.nn.softplus(jax.random.normal(k3, (N, N), dtype=jnp.float32))
    init_graph = raw / jnp.sum(raw, axis=-1, keepdims=True)

    out = graph_learner_forward(feature, init_graph, weight_tensor,
                                epsilon=EPS, graph_skip_conn=SKIP)
    out = jax.block_until_ready(out)
    assert out.shape == (N, N)

    ref = _reference_forward(feature, init_graph, weight_tensor, EPS, SKIP)
    diff = jnp.abs(out - ref)
    # bf16 MXU inputs + bf16 init_graph stream: allow ~5e-3 absolute slack plus
    # a tiny fraction of entries that may flip across the epsilon threshold due
    # to last-bit rounding differences vs the plain-JAX reference.
    frac_bad = float(jnp.mean((diff > 5e-3).astype(jnp.float32)))
    assert frac_bad < 1e-3, (float(jnp.max(diff)), frac_bad)

    print("KERNEL_OK")
</pallas_src>

<mosaic_0001>
module attributes {stable_mosaic.version = 11 : i64} {
  func.func @_graph_learner_kernel(%arg0: i32, %arg1: memref<128x128xbf16, #tpu.memory_space<vmem>>, %arg2: memref<256x128xbf16, #tpu.memory_space<vmem>>, %arg3: memref<128x256xbf16, #tpu.memory_space<vmem>>, %arg4: memref<128x256xf32, #tpu.memory_space<vmem>>) attributes {dimension_semantics = [#tpu.dimension_semantics<parallel>], iteration_bounds = array<i64: 2>, scalar_prefetch = 0 : i64, scratch_operands = 0 : i64, tpu.core_type = #tpu.core_type<tc>, window_params = [{transform_indices = @transform_0, window_bounds = array<i64: 128, 128>}, {pipeline_mode = #tpu.pipeline_mode<synchronous>, transform_indices = @transform_1, window_bounds = array<i64: 256, 128>}, {transform_indices = @transform_2, window_bounds = array<i64: 128, 256>}, {transform_indices = @transform_3, window_bounds = array<i64: 128, 256>}]} {
    %c0 = arith.constant 0 : index
    %c0_0 = arith.constant 0 : index
    %0 = vector.load %arg1[%c0, %c0_0] : memref<128x128xbf16, #tpu.memory_space<vmem>>, vector<128x128xbf16>
    %c0_1 = arith.constant 0 : index
    %c0_2 = arith.constant 0 : index
    %1 = vector.load %arg2[%c0_1, %c0_2] : memref<256x128xbf16, #tpu.memory_space<vmem>>, vector<256x128xbf16>
    %cst = arith.constant dense<0.000000e+00> : vector<128x256xf32>
    %2 = tpu.matmul %0, %1, %cst {dimension_numbers = #tpu.dot_dimension_numbers<[1], [1], [0], [0], [0, 0, 1, 0], [], []>} : vector<128x128xbf16>, vector<256x128xbf16>, vector<128x256xf32> -> vector<128x256xf32>
    %cst_3 = arith.constant 2.500000e-01 : f32
    %3 = vector.broadcast %cst_3 : f32 to vector<128x256xf32>
    %4 = arith.mulf %2, %3 : vector<128x256xf32>
    %cst_4 = arith.constant 1.000000e-01 : f32
    %5 = vector.broadcast %cst_4 : f32 to vector<128x256xf32>
    %6 = arith.cmpf ogt, %4, %5 : vector<128x256xf32>
    %cst_5 = arith.constant 0.000000e+00 : f32
    %7 = vector.broadcast %cst_5 : f32 to vector<128x256xf32>
    %8 = arith.select %6, %4, %7 : vector<128x256xi1>, vector<128x256xf32>
    %cst_6 = arith.constant dense<0.000000e+00> : vector<128xf32>
    %9 = vector.multi_reduction <add>, %8, %cst_6 [1] : vector<128x256xf32> to vector<128xf32>
    %10 = vector.shape_cast %9 : vector<128xf32> to vector<128x1xf32>
    %cst_7 = arith.constant 9.99999996E-13 : f32
    %11 = vector.broadcast %cst_7 : f32 to vector<128x1xf32>
    %12 = arith.maximumf %10, %11 : vector<128x1xf32>
    %13 = tpu.reciprocal %12 : vector<128x1xf32> -> vector<128x1xf32>
    %14 = vector.broadcast %13 : vector<128x1xf32> to vector<128x256xf32>
    %15 = arith.mulf %8, %14 : vector<128x256xf32>
    %c0_8 = arith.constant 0 : index
    %c0_9 = arith.constant 0 : index
    %16 = vector.load %arg3[%c0_8, %c0_9] : memref<128x256xbf16, #tpu.memory_space<vmem>>, vector<128x256xbf16>
    %17 = arith.extf %16 : vector<128x256xbf16> to vector<128x256xf32>
    %cst_10 = arith.constant 3.000000e-01 : f32
    %18 = vector.broadcast %cst_10 : f32 to vector<128x256xf32>
    %19 = arith.mulf %18, %17 : vector<128x256xf32>
    %cst_11 = arith.constant 0.699999988 : f32
    %20 = vector.broadcast %cst_11 : f32 to vector<128x256xf32>
    %21 = arith.mulf %20, %15 : vector<128x256xf32>
    %22 = arith.addf %19, %21 : vector<128x256xf32>
    %c0_12 = arith.constant 0 : index
    %c0_13 = arith.constant 0 : index
    %23 = vector.load %arg4[%c0_12, %c0_13] : memref<128x256xf32, #tpu.memory_space<vmem>>, vector<128x256xf32>
    tpu.vector_store %arg4[%c0_12, %c0_13], %22 {strides = array<i32>} : memref<128x256xf32, #tpu.memory_space<vmem>>, vector<128x256xf32>,
    return
  }
  func.func @transform_0(%arg0: i32) -> (i32, i32) {
    %c0_i32 = arith.constant 0 : i32
    %c0_i32_0 = arith.constant 0 : i32
    return %arg0, %c0_i32 : i32, i32
  }
  func.func @transform_1(%arg0: i32) -> (i32, i32) {
    %c0_i32 = arith.constant 0 : i32
    %c0_i32_0 = arith.constant 0 : i32
    %c0_i32_1 = arith.constant 0 : i32
    return %c0_i32, %c0_i32_0 : i32, i32
  }
  func.func @transform_2(%arg0: i32) -> (i32, i32) {
    %c0_i32 = arith.constant 0 : i32
    %c0_i32_0 = arith.constant 0 : i32
    return %arg0, %c0_i32 : i32, i32
  }
  func.func @transform_3(%arg0: i32) -> (i32, i32) {
    %c0_i32 = arith.constant 0 : i32
    %c0_i32_0 = arith.constant 0 : i32
    return %arg0, %c0_i32 : i32, i32
  }
}

module attributes {stable_mosaic.version = 11 : i64} {
  func.func @_graph_learner_kernel(%arg0: i32, %arg1: memref<128x128xbf16, #tpu.memory_space<vmem>>, %arg2: memref<256x128xbf16, #tpu.memory_space<vmem>>, %arg3: memref<128x256xbf16, #tpu.memory_space<vmem>>, %arg4: memref<128x256xf32, #tpu.memory_space<vmem>>) attributes {dimension_semantics = [#tpu.dimension_semantics<parallel>], iteration_bounds = array<i64: 2>, scalar_prefetch = 0 : i64, scratch_operands = 0 : i64, tpu.core_type = #tpu.core_type<tc>, window_params = [{transform_indices = @transform_0, window_bounds = array<i64: 128, 128>}, {pipeline_mode = #tpu.pipeline_mode<synchronous>, transform_indices = @transform_1, window_bounds = array<i64: 256, 128>}, {transform_indices = @transform_2, window_bounds = array<i64: 128, 256>}, {transform_indices = @transform_3, window_bounds = array<i64: 128, 256>}]} {
    %c0 = arith.constant 0 : index
    %c0_0 = arith.constant 0 : index
    %0 = vector.load %arg1[%c0, %c0_0] : memref<128x128xbf16, #tpu.memory_space<vmem>>, vector<128x128xbf16>
    %c0_1 = arith.constant 0 : index
    %c0_2 = arith.constant 0 : index
    %1 = vector.load %arg2[%c0_1, %c0_2] : memref<256x128xbf16, #tpu.memory_space<vmem>>, vector<256x128xbf16>
    %cst = arith.constant dense<0.000000e+00> : vector<128x256xf32>
    %2 = tpu.matmul %0, %1, %cst {dimension_numbers = #tpu.dot_dimension_numbers<[1], [1], [0], [0], [0, 0, 1, 0], [], []>} : vector<128x128xbf16>, vector<256x128xbf16>, vector<128x256xf32> -> vector<128x256xf32>
    %cst_3 = arith.constant 2.500000e-01 : f32
    %3 = vector.broadcast %cst_3 : f32 to vector<128x256xf32>
    %4 = arith.mulf %2, %3 : vector<128x256xf32>
    %cst_4 = arith.constant 1.000000e-01 : f32
    %5 = vector.broadcast %cst_4 : f32 to vector<128x256xf32>
    %6 = arith.cmpf ogt, %4, %5 : vector<128x256xf32>
    %cst_5 = arith.constant 0.000000e+00 : f32
    %7 = vector.broadcast %cst_5 : f32 to vector<128x256xf32>
    %8 = arith.select %6, %4, %7 : vector<128x256xi1>, vector<128x256xf32>
    %cst_6 = arith.constant dense<0.000000e+00> : vector<128xf32>
    %9 = vector.multi_reduction <add>, %8, %cst_6 [1] : vector<128x256xf32> to vector<128xf32>
    %10 = vector.shape_cast %9 : vector<128xf32> to vector<128x1xf32>
    %cst_7 = arith.constant 9.99999996E-13 : f32
    %11 = vector.broadcast %cst_7 : f32 to vector<128x1xf32>
    %12 = arith.maximumf %10, %11 : vector<128x1xf32>
    %13 = tpu.reciprocal %12 : vector<128x1xf32> -> vector<128x1xf32>
    %14 = vector.broadcast %13 : vector<128x1xf32> to vector<128x256xf32>
    %15 = arith.mulf %8, %14 : vector<128x256xf32>
    %c0_8 = arith.constant 0 : index
    %c0_9 = arith.constant 0 : index
    %16 = vector.load %arg3[%c0_8, %c0_9] : memref<128x256xbf16, #tpu.memory_space<vmem>>, vector<128x256xbf16>
    %17 = arith.extf %16 : vector<128x256xbf16> to vector<128x256xf32>
    %cst_10 = arith.constant 3.000000e-01 : f32
    %18 = vector.broadcast %cst_10 : f32 to vector<128x256xf32>
    %19 = arith.mulf %18, %17 : vector<128x256xf32>
    %cst_11 = arith.constant 0.699999988 : f32
    %20 = vector.broadcast %cst_11 : f32 to vector<128x256xf32>
    %21 = arith.mulf %20, %15 : vector<128x256xf32>
    %22 = arith.addf %19, %21 : vector<128x256xf32>
    %c0_12 = arith.constant 0 : index
    %c0_13 = arith.constant 0 : index
    %23 = vector.load %arg4[%c0_12, %c0_13] : memref<128x256xf32, #tpu.memory_space<vmem>>, vector<128x256xf32>
    tpu.vector_store %arg4[%c0_12, %c0_13], %22 {strides = array<i32>} : memref<128x256xf32, #tpu.memory_space<vmem>>, vector<128x256xf32>,
    return
  }
  func.func @transform_0(%arg0: i32) -> (i32, i32) {
    %c0_i32 = arith.constant 0 : i32
    %c0_i32_0 = arith.constant 0 : i32
    return %arg0, %c0_i32 : i32, i32
  }
  func.func @transform_1(%arg0: i32) -> (i32, i32) {
    %c0_i32 = arith.constant 0 : i32
    %c0_i32_0 = arith.constant 0 : i32
    %c0_i32_1 = arith.constant 0 : i32
    return %c0_i32, %c0_i32_0 : i32, i32
  }
  func.func @transform_2(%arg0: i32) -> (i32, i32) {
    %c0_i32 = arith.constant 0 : i32
    %c0_i32_0 = arith.constant 0 : i32
    return %arg0, %c0_i32 : i32, i32
  }
  func.func @transform_3(%arg0: i32) -> (i32, i32) {
    %c0_i32 = arith.constant 0 : i32
    %c0_i32_0 = arith.constant 0 : i32
    return %arg0, %c0_i32 : i32, i32
  }
}

</mosaic_0001>

<llo_original>
// kernel: tpu_custom_call.1
$region0: #{tpu_custom_call.1}
  #allocation0 [shape = 'u32[]', space=smem, size = 0x4, offset = 0x4, fixed_abs, tag = 'smem constant byte address 0x4 - core index']
  #allocation1 [shape = 'u32[144,128]{1,0:T(1,128)}', space=vmem, size = 0x12000, scoped, tag = 'internal scratch']
  %s0 = inlined_call_operand.hbm [shape: bf16[256,128], index: 0, kind: input, shape index: {}]
  %s1 = inlined_call_operand.hbm [shape: bf16[256,128], index: 1, kind: input, shape index: {}]
  %s2 = inlined_call_operand.hbm [shape: bf16[256,256], index: 2, kind: input, shape index: {}]
  %s3 = inlined_call_operand.hbm [shape: f32[256,256], index: 3, kind: output, shape index: {}]
  %s4 = sld [smem:[#allocation0]]
  $region57: #{tpu_custom_call.1} parent=0
    _
  %s6 = ssub.s32 1, %s4
  %s7 = scalar_select 0, %s6, %s4
  $region1: #{tpu_custom_call.1} parent=0
    #allocation2 [shape = 'u8[65536]{0}', space=vmem, size = 0x10000, scoped, tag = 'input window, operand 0']
    #allocation3 [shape = 's32[2]{0}', space=sflag, size = 0x8, scoped, tag = 'scoped memory for tpu_custom_call.1']
    #allocation4 [shape = 's32[2]{0}', space=sflag, size = 0x8, scoped, tag = 'scoped memory for tpu_custom_call.1']
    #allocation5 [shape = 'u8[65536]{0}', space=vmem, size = 0x10000, scoped, tag = 'input window, operand 1, single buffered']
    #allocation6 [shape = 's32[1]{0}', space=sflag, size = 0x4, scoped, tag = 'scoped memory for tpu_custom_call.1']
    #allocation7 [shape = 'u8[131072]{0}', space=vmem, size = 0x20000, scoped, tag = 'input window, operand 2']
    #allocation8 [shape = 'u8[262144]{0}', space=vmem, size = 0x40000, scoped, tag = 'output window, operand 0']
    %8 = vsyncpa [#allocation3], 0
    %s9 = scalar_lea.sflag [#allocation3], 1
    %10 = vsyncpa %s9, 0
    %11 = vsyncpa [#allocation6], 0
    %12 = vsyncpa [#allocation4], 0
    %s13 = scalar_lea.sflag [#allocation4], 1
    %14 = vsyncpa %s13, 0
    loop: start=0, step=1, limit=4
    $region2: #{tpu_custom_call.1} parent=1 // loop_pre_header
      _
    $region3: #{tpu_custom_call.1} parent=1 // loop_header
      %s16 = sphi 0, %s20
      %p17 = scmp.ge.s32.totalorder %s16, 4
      %s26 = sphi 0, %s28
      %s29 = sphi 0, %s26
      %s30 = sphi 0, %s29
      %s46 = sphi 0, %s30
      %s50 = sphi 0, %s50
      %s52 = sphi 0, %s50
      %s53 = sphi 0, %s52
      %s67 = sphi 0, %s53
      %s73 = sphi 0, %s75
      %s76 = sphi 0, %s73
      %s77 = sphi 0, %s76
      %s93 = sphi 0, %s77
      %s99 = sphi 0, %s101
      %s102 = sphi 0, %s99
      %s103 = sphi 0, %s102
      %s119 = sphi 0, %s103
    $region4: #{tpu_custom_call.1} parent=1 // loop_header_branch
      %19 = sbr.rel (%p17) target = $region8
    $region5: #{tpu_custom_call.1} parent=1 // loop_body
      %s21 = ssub.s32 %s16, 1
      %s22 = ssub.s32 %s16, 2
      %s23 = sadd.s32 %s16, 1
      %s24 = ssub.s32 %s16, %s23
      %p25 = scmp.eq.s32.totalorder %s24, 0
      %s27 = sadd.s32 %s26, 1
      %s28 = scalar_select %p25, %s26, %s27
      %p31 = pneg %p25
      %p32 = scmp.eq.s32.totalorder %s16, 1
      %p33 = por %p31, %p32
      %p34 = scmp.ne.s32.totalorder %s26, %s29
      %p35 = scmp.eq.s32.totalorder %s16, 0
      %p36 = por %p34, %p35
      %p37 = scmp.ne.s32.totalorder %s26, %s29
      %p38 = scmp.eq.s32.totalorder %s21, 1
      %p39 = por %p37, %p38
      %p40 = scmp.ne.s32.totalorder %s29, %s30
      %p41 = scmp.eq.s32.totalorder %s21, 0
      %p42 = por %p40, %p41
      %p43 = scmp.ne.s32.totalorder %s29, %s30
      %p44 = scmp.eq.s32.totalorder %s22, 1
      %p45 = por %p43, %p44
      %p47 = scmp.ne.s32.totalorder %s30, %s46
      %p48 = scmp.eq.s32.totalorder %s22, 0
      %p49 = por %p47, %p48
      %s51 = sadd.s32 %s50, 1
      %p54 = scmp.eq.s32.totalorder %s16, 1
      %p55 = scmp.ne.s32.totalorder %s50, %s52
      %p56 = scmp.eq.s32.totalorder %s16, 0
      %p57 = por %p55, %p56
      %p58 = scmp.ne.s32.totalorder %s50, %s52
      %p59 = scmp.eq.s32.totalorder %s21, 1
      %p60 = por %p58, %p59
      %p61 = scmp.ne.s32.totalorder %s52, %s53
      %p62 = scmp.eq.s32.totalorder %s21, 0
      %p63 = por %p61, %p62
      %p64 = scmp.ne.s32.totalorder %s52, %s53
      %p65 = scmp.eq.s32.totalorder %s22, 1
      %p66 = por %p64, %p65
      %p68 = scmp.ne.s32.totalorder %s53, %s67
      %p69 = scmp.eq.s32.totalorder %s22, 0
      %p70 = por %p68, %p69
      %s71 = ssub.s32 %s16, %s23
      %p72 = scmp.eq.s32.totalorder %s71, 0
      %s74 = sadd.s32 %s73, 1
      %s75 = scalar_select %p72, %s73, %s74
      %p78 = pneg %p72
      %p79 = scmp.eq.s32.totalorder %s16, 1
      %p80 = por %p78, %p79
      %p81 = scmp.ne.s32.totalorder %s73, %s76
      %p82 = scmp.eq.s32.totalorder %s16, 0
      %p83 = por %p81, %p82
      %p84 = scmp.ne.s32.totalorder %s73, %s76
      %p85 = scmp.eq.s32.totalorder %s21, 1
      %p86 = por %p84, %p85
      %p87 = scmp.ne.s32.totalorder %s76, %s77
      %p88 = scmp.eq.s32.totalorder %s21, 0
      %p89 = por %p87, %p88
      %p90 = scmp.ne.s32.totalorder %s76, %s77
      %p91 = scmp.eq.s32.totalorder %s22, 1
      %p92 = por %p90, %p91
      %p94 = scmp.ne.s32.totalorder %s77, %s93
      %p95 = scmp.eq.s32.totalorder %s22, 0
      %p96 = por %p94, %p95
      %s97 = ssub.s32 %s16, %s23
      %p98 = scmp.eq.s32.totalorder %s97, 0
      %s100 = sadd.s32 %s99, 1
      %s101 = scalar_select %p98, %s99, %s100
      %p104 = pneg %p98
      %p105 = scmp.eq.s32.totalorder %s16, 1
      %p106 = por %p104, %p105
      %p107 = scmp.ne.s32.totalorder %s99, %s102
      %p108 = scmp.eq.s32.totalorder %s16, 0
      %p109 = por %p107, %p108
      %p110 = scmp.ne.s32.totalorder %s99, %s102
      %p111 = scmp.eq.s32.totalorder %s21, 1
      %p112 = por %p110, %p111
      %p113 = scmp.ne.s32.totalorder %s102, %s103
      %p114 = scmp.eq.s32.totalorder %s21, 0
      %p115 = por %p113, %p114
      %p116 = scmp.ne.s32.totalorder %s102, %s103
      %p117 = scmp.eq.s32.totalorder %s22, 1
      %p118 = por %p116, %p117
      %p120 = scmp.ne.s32.totalorder %s103, %s119
      %p121 = scmp.eq.s32.totalorder %s22, 0
      %p122 = por %p120, %p121
      %p123 = scmp.le.s32.totalorder 1, %s16
      %p124 = scmp.lt.s32.totalorder %s16, 3
      %p125 = pnand %p123, %p124
      %p126 = pneg %p125
      // Predicated region
      $region9: #{tpu_custom_call.1} parent=5 // pred_check
        _
      $region10: #{tpu_custom_call.1} parent=5 // pred_check_branch
        %128 = sbr.rel (%p125) target = $region12
      $region11: #{tpu_custom_call.1} parent=5 // pred_region
        %s129 = ssub.s32 %s16, 1
        // Predicated region
        $region13: #{tpu_custom_call.1} parent=11 // pred_check
          %p130 = pneg %p63
        $region14: #{tpu_custom_call.1} parent=11 // pred_check_branch
          %132 = sbr.rel (%p130) target = $region16
        $region15: #{tpu_custom_call.1} parent=11 // pred_region
          %s134 = ssub.s32 2048, 2048
          %135 = vsyncadd [#allocation6], %s134
          %s136 = sshll.u32 [#allocation5], 4
          %s137 = int_to_ptr.vmem [resolvable:$true] %s136
          %142 = dma.hbm_to_vmem [thread:$0]  %s1, 2048, %s137, [#allocation6], 64, 64, 4
        $region16: #{tpu_custom_call.1} parent=11 // pred_fallthru
          _
      $region12: #{tpu_custom_call.1} parent=5 // pred_fallthru
        _
      %p143 = scmp.lt.s32.totalorder %s16, 2
      // Predicated region
      $region17: #{tpu_custom_call.1} parent=5 // pred_check
        %p144 = pneg %p143
      $region18: #{tpu_custom_call.1} parent=5 // pred_check_branch
        %146 = sbr.rel (%p144) target = $region20
      $region19: #{tpu_custom_call.1} parent=5 // pred_region
        // Predicated region
        $region21: #{tpu_custom_call.1} parent=19 // pred_check
          %p147 = pneg %p36
        $region22: #{tpu_custom_call.1} parent=19 // pred_check_branch
          %149 = sbr.rel (%p147) target = $region24
        $region23: #{tpu_custom_call.1} parent=19 // pred_region
          %s150 = sand.u32 %s16, 1
          %s151 = scalar_lea.sflag [#allocation3], %s150
          %s152 = sand.u32 %s26, 1
          %s153 = smul.addr %s152, 64
          %s154 = scalar_lea.vmem [#allocation2], %s153
          %s155 = smul.u32 16, %s16
          %s157 = ssub.s32 1024, 1024
          %158 = vsyncadd %s151, %s157
          %s159 = smul.addr %s155, 64
          %s160 = scalar_lea.hbm %s0, %s159
          %s161 = sshll.u32 %s154, 4
          %s162 = int_to_ptr.vmem [resolvable:$true] %s161
          %167 = dma.hbm_to_vmem [thread:$0]  %s160, 1024, %s162, %s151, 64, 64, 4
        $region24: #{tpu_custom_call.1} parent=19 // pred_fallthru
          _
        // Predicated region
        $region25: #{tpu_custom_call.1} parent=19 // pred_check
          %p168 = pneg %p83
        $region26: #{tpu_custom_call.1} parent=19 // pred_check_branch
          %170 = sbr.rel (%p168) target = $region28
        $region27: #{tpu_custom_call.1} parent=19 // pred_region
          %s171 = sand.u32 %s16, 1
          %s172 = scalar_lea.sflag [#allocation3], %s171
          %s173 = sand.u32 %s73, 1
          %s174 = smul.addr %s173, 128
          %s175 = scalar_lea.vmem [#allocation7], %s174
          %s176 = smul.u32 16, %s16
          %s178 = ssub.s32 2048, 2048
          %179 = vsyncadd %s172, %s178
          %s180 = smul.addr %s176, 2
          %s181 = smul.addr %s180, 64
          %s182 = scalar_lea.hbm %s2, %s181
          %s183 = sshll.u32 %s175, 4
          %s184 = int_to_ptr.vmem [resolvable:$true] %s183
          %189 = dma.hbm_to_vmem [thread:$0]  %s182, 2048, %s184, %s172, 128, 128, 8
        $region28: #{tpu_custom_call.1} parent=19 // pred_fallthru
          _
      $region20: #{tpu_custom_call.1} parent=5 // pred_fallthru
        _
      %p190 = scmp.le.s32.totalorder 1, %s16
      %p191 = scmp.lt.s32.totalorder %s16, 3
      %p192 = pnand %p190, %p191
      %p193 = pneg %p192
      // Predicated region
      $region29: #{tpu_custom_call.1} parent=5 // pred_check
        _
      $region30: #{tpu_custom_call.1} parent=5 // pred_check_branch
        %195 = sbr.rel (%p192) target = $region32
      $region31: #{tpu_custom_call.1} parent=5 // pred_region
        %s196 = ssub.s32 %s16, 1
        %s197 = sand.u32 %s21, 1
        %s198 = scalar_lea.sflag [#allocation3], %s197
        %s199 = sand.u32 %s29, 1
        %s200 = smul.addr %s199, 64
        %s201 = scalar_lea.vmem [#allocation2], %s200
        // Predicated region
        $region33: #{tpu_custom_call.1} parent=31 // pred_check
          %p202 = pneg %p42
        $region34: #{tpu_custom_call.1} parent=31 // pred_check_branch
          %204 = sbr.rel (%p202) target = $region36
        $region35: #{tpu_custom_call.1} parent=31 // pred_region
          %205 = dma.done %s198, 1024
        $region36: #{tpu_custom_call.1} parent=31 // pred_fallthru
          _
        // Predicated region
        $region37: #{tpu_custom_call.1} parent=31 // pred_check
          %p206 = pneg %p63
        $region38: #{tpu_custom_call.1} parent=31 // pred_check_branch
          %208 = sbr.rel (%p206) target = $region40
        $region39: #{tpu_custom_call.1} parent=31 // pred_region
          %209 = dma.done [#allocation6], 2048
        $region40: #{tpu_custom_call.1} parent=31 // pred_fallthru
          _
        %s210 = sand.u32 %s21, 1
        %s211 = scalar_lea.sflag [#allocation3], %s210
        %s212 = sand.u32 %s76, 1
        %s213 = smul.addr %s212, 128
        %s214 = scalar_lea.vmem [#allocation7], %s213
        // Predicated region
        $region41: #{tpu_custom_call.1} parent=31 // pred_check
          %p215 = pneg %p89
        $region42: #{tpu_custom_call.1} parent=31 // pred_check_branch
          %217 = sbr.rel (%p215) target = $region44
        $region43: #{tpu_custom_call.1} parent=31 // pred_region
          %218 = dma.done %s211, 2048
        $region44: #{tpu_custom_call.1} parent=31 // pred_fallthru
          _
        %s219 = sand.u32 %s21, 1
        %s220 = scalar_lea.sflag [#allocation3], %s219
        %s221 = sand.u32 %s29, 1
        %s222 = smul.addr %s221, 64
        %s223 = scalar_lea.vmem [#allocation2], %s222
        %p224 = pneg %p42
        %p225 = pneg %p39
        %p226 = pneg %p63
        %p227 = pneg %p60
        %s228 = sand.u32 %s21, 1
        %s229 = scalar_lea.sflag [#allocation3], %s228
        %s230 = sand.u32 %s76, 1
        %s231 = smul.addr %s230, 128
        %s232 = scalar_lea.vmem [#allocation7], %s231
        %p233 = pneg %p89
        %p234 = pneg %p86
        %p235 = pneg %p115
        %p236 = pneg %p112
        %s237 = sand.u32 %s102, 1
        %s238 = scalar_lea.sflag [#allocation4], %s237
        %s239 = sand.u32 %s102, 1
        %s240 = smul.addr %s239, 256
        %s241 = scalar_lea.vmem [#allocation8], %s240
        %s242 = smul.u32 16, %s21
        %s243 = smul.u32 16, %s21
        %s244 = smul.u32 16, %s21
        %v246 = vld [vmem:[%s201] sm:$0xf]
        %v247 = vld [vmem:[%s201 + $0x4] sm:$0xf]
        %v248 = vld [vmem:[%s201 + $0x8] sm:$0xf]
        %v249 = vld [vmem:[%s201 + $0xc] sm:$0xf]
        %v250 = vld [vmem:[%s201 + $0x10] sm:$0xf]
        %v251 = vld [vmem:[%s201 + $0x14] sm:$0xf]
        %v252 = vld [vmem:[%s201 + $0x18] sm:$0xf]
        %v253 = vld [vmem:[%s201 + $0x1c] sm:$0xf]
        %v254 = vld [vmem:[%s201 + $0x20] sm:$0xf]
        %v255 = vld [vmem:[%s201 + $0x24] sm:$0xf]
        %v256 = vld [vmem:[%s201 + $0x28] sm:$0xf]
        %v257 = vld [vmem:[%s201 + $0x2c] sm:$0xf]
        %v258 = vld [vmem:[%s201 + $0x30] sm:$0xf]
        %v259 = vld [vmem:[%s201 + $0x34] sm:$0xf]
        %v260 = vld [vmem:[%s201 + $0x38] sm:$0xf]
        %v261 = vld [vmem:[%s201 + $0x3c] sm:$0xf]
        %v262 = vld [vmem:[#allocation5] sm:$0xf]
        %v263 = vld [vmem:[#allocation5 + $0x4] sm:$0xf]
        %v264 = vld [vmem:[#allocation5 + $0x8] sm:$0xf]
        %v265 = vld [vmem:[#allocation5 + $0xc] sm:$0xf]
        %v266 = vld [vmem:[#allocation5 + $0x10] sm:$0xf]
        %v267 = vld [vmem:[#allocation5 + $0x14] sm:$0xf]
        %v268 = vld [vmem:[#allocation5 + $0x18] sm:$0xf]
        %v269 = vld [vmem:[#allocation5 + $0x1c] sm:$0xf]
        %v270 = vld [vmem:[#allocation5 + $0x20] sm:$0xf]
        %v271 = vld [vmem:[#allocation5 + $0x24] sm:$0xf]
        %v272 = vld [vmem:[#allocation5 + $0x28] sm:$0xf]
        %v273 = vld [vmem:[#allocation5 + $0x2c] sm:$0xf]
        %v274 = vld [vmem:[#allocation5 + $0x30] sm:$0xf]
        %v275 = vld [vmem:[#allocation5 + $0x34] sm:$0xf]
        %v276 = vld [vmem:[#allocation5 + $0x38] sm:$0xf]
        %v277 = vld [vmem:[#allocation5 + $0x3c] sm:$0xf]
        %v278 = vld [vmem:[#allocation5 + $0x40] sm:$0xf]
        %v279 = vld [vmem:[#allocation5 + $0x44] sm:$0xf]
        %v280 = vld [vmem:[#allocation5 + $0x48] sm:$0xf]
        %v281 = vld [vmem:[#allocation5 + $0x4c] sm:$0xf]
        %v282 = vld [vmem:[#allocation5 + $0x50] sm:$0xf]
        %v283 = vld [vmem:[#allocation5 + $0x54] sm:$0xf]
        %v284 = vld [vmem:[#allocation5 + $0x58] sm:$0xf]
        %v285 = vld [vmem:[#allocation5 + $0x5c] sm:$0xf]
        %v286 = vld [vmem:[#allocation5 + $0x60] sm:$0xf]
        %v287 = vld [vmem:[#allocation5 + $0x64] sm:$0xf]
        %v288 = vld [vmem:[#allocation5 + $0x68] sm:$0xf]
        %v289 = vld [vmem:[#allocation5 + $0x6c] sm:$0xf]
        %v290 = vld [vmem:[#allocation5 + $0x70] sm:$0xf]
        %v291 = vld [vmem:[#allocation5 + $0x74] sm:$0xf]
        %v292 = vld [vmem:[#allocation5 + $0x78] sm:$0xf]
        %v293 = vld [vmem:[#allocation5 + $0x7c] sm:$0xf]
        %v310 = vunpack.c.l.b16 %v246
        %v311 = vunpack.c.l.b16 %v247
        %v312 = vunpack.c.l.b16 %v248
        %v313 = vunpack.c.l.b16 %v249
        %v314 = vunpack.c.l.b16 %v250
        %v315 = vunpack.c.l.b16 %v251
        %v316 = vunpack.c.l.b16 %v252
        %v317 = vunpack.c.l.b16 %v253
        %v318 = vunpack.c.l.b16 %v254
        %v319 = vunpack.c.l.b16 %v255
        %v320 = vunpack.c.l.b16 %v256
        %v321 = vunpack.c.l.b16 %v257
        %v322 = vunpack.c.l.b16 %v258
        %v323 = vunpack.c.l.b16 %v259
        %v324 = vunpack.c.l.b16 %v260
        %v325 = vunpack.c.l.b16 %v261
        %v326 = vpack.c.b16 %v311, %v310
        %v327 = vpack.c.b16 %v313, %v312
        %v328 = vpack.c.b16 %v315, %v314
        %v329 = vpack.c.b16 %v317, %v316
        %v330 = vpack.c.b16 %v319, %v318
        %v331 = vpack.c.b16 %v321, %v320
        %v332 = vpack.c.b16 %v323, %v322
        %v333 = vpack.c.b16 %v325, %v324
        %v374 = vunpack.c.l.b16 %v262
        %v375 = vunpack.c.l.b16 %v263
        %v376 = vunpack.c.l.b16 %v264
        %v377 = vunpack.c.l.b16 %v265
        %v378 = vunpack.c.l.b16 %v266
        %v379 = vunpack.c.l.b16 %v267
        %v380 = vunpack.c.l.b16 %v268
        %v381 = vunpack.c.l.b16 %v269
        %v382 = vunpack.c.l.b16 %v270
        %v383 = vunpack.c.l.b16 %v271
        %v384 = vunpack.c.l.b16 %v272
        %v385 = vunpack.c.l.b16 %v273
        %v386 = vunpack.c.l.b16 %v274
        %v387 = vunpack.c.l.b16 %v275
        %v388 = vunpack.c.l.b16 %v276
        %v389 = vunpack.c.l.b16 %v277
        %v390 = vunpack.c.l.b16 %v278
        %v391 = vunpack.c.l.b16 %v279
        %v392 = vunpack.c.l.b16 %v280
        %v393 = vunpack.c.l.b16 %v281
        %v394 = vunpack.c.l.b16 %v282
        %v395 = vunpack.c.l.b16 %v283
        %v396 = vunpack.c.l.b16 %v284
        %v397 = vunpack.c.l.b16 %v285
        %v398 = vunpack.c.l.b16 %v286
        %v399 = vunpack.c.l.b16 %v287
        %v400 = vunpack.c.l.b16 %v288
        %v401 = vunpack.c.l.b16 %v289
        %v402 = vunpack.c.l.b16 %v290
        %v403 = vunpack.c.l.b16 %v291
        %v404 = vunpack.c.l.b16 %v292
        %v405 = vunpack.c.l.b16 %v293
        %v406 = vpack.c.b16 %v375, %v374
        %v407 = vpack.c.b16 %v377, %v376
        %v408 = vpack.c.b16 %v379, %v378
        %v409 = vpack.c.b16 %v381, %v380
        %v410 = vpack.c.b16 %v383, %v382
        %v411 = vpack.c.b16 %v385, %v384
        %v412 = vpack.c.b16 %v387, %v386
        %v413 = vpack.c.b16 %v389, %v388
        %v414 = vpack.c.b16 %v391, %v390
        %v415 = vpack.c.b16 %v393, %v392
        %v416 = vpack.c.b16 %v395, %v394
        %v417 = vpack.c.b16 %v397, %v396
        %v418 = vpack.c.b16 %v399, %v398
        %v419 = vpack.c.b16 %v401, %v400
        %v420 = vpack.c.b16 %v403, %v402
        %v421 = vpack.c.b16 %v405, %v404
        %438 = vmatprep.subr.bf16.mxu0 0
        %439 = vmatpush1.bf16.xpose.msra.mxu0 %v406
        %440 = vmatprep.subr.bf16.mxu0 0
        %441 = vmatpush1.bf16.xpose.msra.mxu0 %v407
        %442 = vmatprep.subr.bf16.mxu0 0
        %443 = vmatpush1.bf16.xpose.msra.mxu0 %v408
        %444 = vmatprep.subr.bf16.mxu0 0
        %445 = vmatpush1.bf16.xpose.msra.mxu0 %v409
        %446 = vmatprep.subr.bf16.mxu0 0
        %447 = vmatpush1.bf16.xpose.msra.mxu0 %v410
        %448 = vmatprep.subr.bf16.mxu0 0
        %449 = vmatpush1.bf16.xpose.msra.mxu0 %v411
        %450 = vmatprep.subr.bf16.mxu0 0
        %451 = vmatpush1.bf16.xpose.msra.mxu0 %v412
        %452 = vmatprep.subr.bf16.mxu0 0
        %453 = vmatpush1.bf16.xpose.msra.mxu0 %v413
        %454 = vmatprep.subr.bf16.mxu0 0
        %455 = vmatpush1.bf16.xpose.msra.mxu0 %v414
        %456 = vmatprep.subr.bf16.mxu0 0
        %457 = vmatpush1.bf16.xpose.msra.mxu0 %v415
        %458 = vmatprep.subr.bf16.mxu0 0
        %459 = vmatpush1.bf16.xpose.msra.mxu0 %v416
        %460 = vmatprep.subr.bf16.mxu0 0
        %461 = vmatpush1.bf16.xpose.msra.mxu0 %v417
        %462 = vmatprep.subr.bf16.mxu0 0
        %463 = vmatpush1.bf16.xpose.msra.mxu0 %v418
        %464 = vmatprep.subr.bf16.mxu0 0
        %465 = vmatpush1.bf16.xpose.msra.mxu0 %v419
        %466 = vmatprep.subr.bf16.mxu0 0
        %467 = vmatpush1.bf16.xpose.msra.mxu0 %v420
        %468 = vmatprep.subr.bf16.mxu0 0
        %469 = vmatpush1.bf16.xpose.msra.mxu0 %v421
        %470 = vmatprep.mubr.bf16.mxu0 0
        %471 = vmatmul.mubr.bf16.gmra.mrb[0].mxu0 %v326
        %v472 = vpop.f32.mrb[0].mxu0
        %v473 = vadd.f32 0.0, %v472
        %v474 = vpop.f32.mrb[0].mxu0
        %v475 = vadd.f32 0.0, %v474
        %v476 = vpop.f32.mrb[0].mxu0
        %v477 = vadd.f32 0.0, %v476
        %v478 = vpop.f32.mrb[0].mxu0
        %v479 = vadd.f32 0.0, %v478
        %480 = vmatprep.mubr.bf16.mxu0 0
        %481 = vmatmul.mubr.bf16.gmra.mrb[0].mxu0 %v327
        %v482 = vpop.f32.mrb[0].mxu0
        %v483 = vadd.f32 0.0, %v482
        %v484 = vpop.f32.mrb[0].mxu0
        %v485 = vadd.f32 0.0, %v484
        %v486 = vpop.f32.mrb[0].mxu0
        %v487 = vadd.f32 0.0, %v486
        %v488 = vpop.f32.mrb[0].mxu0
        %v489 = vadd.f32 0.0, %v488
        %490 = vmatprep.mubr.bf16.mxu0 0
        %491 = vmatmul.mubr.bf16.gmra.mrb[0].mxu0 %v328
        %v492 = vpop.f32.mrb[0].mxu0
        %v493 = vadd.f32 0.0, %v492
        %v494 = vpop.f32.mrb[0].mxu0
        %v495 = vadd.f32 0.0, %v494
        %v496 = vpop.f32.mrb[0].mxu0
        %v497 = vadd.f32 0.0, %v496
        %v498 = vpop.f32.mrb[0].mxu0
        %v499 = vadd.f32 0.0, %v498
        %500 = vmatprep.mubr.bf16.mxu0 0
        %501 = vmatmul.mubr.bf16.gmra.mrb[0].mxu0 %v329
        %v502 = vpop.f32.mrb[0].mxu0
        %v503 = vadd.f32 0.0, %v502
        %v504 = vpop.f32.mrb[0].mxu0
        %v505 = vadd.f32 0.0, %v504
        %v506 = vpop.f32.mrb[0].mxu0
        %v507 = vadd.f32 0.0, %v506
        %v508 = vpop.f32.mrb[0].mxu0
        %v509 = vadd.f32 0.0, %v508
        %510 = vmatprep.mubr.bf16.mxu0 0
        %511 = vmatmul.mubr.bf16.gmra.mrb[0].mxu0 %v330
        %v512 = vpop.f32.mrb[0].mxu0
        %v513 = vadd.f32 0.0, %v512
        %v514 = vpop.f32.mrb[0].mxu0
        %v515 = vadd.f32 0.0, %v514
        %v516 = vpop.f32.mrb[0].mxu0
        %v517 = vadd.f32 0.0, %v516
        %v518 = vpop.f32.mrb[0].mxu0
        %v519 = vadd.f32 0.0, %v518
        %520 = vmatprep.mubr.bf16.mxu0 0
        %521 = vmatmul.mubr.bf16.gmra.mrb[0].mxu0 %v331
        %v522 = vpop.f32.mrb[0].mxu0
        %v523 = vadd.f32 0.0, %v522
        %v524 = vpop.f32.mrb[0].mxu0
        %v525 = vadd.f32 0.0, %v524
        %v526 = vpop.f32.mrb[0].mxu0
        %v527 = vadd.f32 0.0, %v526
        %v528 = vpop.f32.mrb[0].mxu0
        %v529 = vadd.f32 0.0, %v528
        %530 = vmatprep.mubr.bf16.mxu0 0
        %531 = vmatmul.mubr.bf16.gmra.mrb[0].mxu0 %v332
        %v532 = vpop.f32.mrb[0].mxu0
        %v533 = vadd.f32 0.0, %v532
        %v534 = vpop.f32.mrb[0].mxu0
        %v535 = vadd.f32 0.0, %v534
        %v536 = vpop.f32.mrb[0].mxu0
        %v537 = vadd.f32 0.0, %v536
        %v538 = vpop.f32.mrb[0].mxu0
        %v539 = vadd.f32 0.0, %v538
        %540 = vmatprep.mubr.bf16.mxu0 0
        %541 = vmatmul.mubr.bf16.gmra.mrb[0].mxu0 %v333
        %v542 = vpop.f32.mrb[0].mxu0
        %v543 = vadd.f32 0.0, %v542
        %v544 = vpop.f32.mrb[0].mxu0
        %v545 = vadd.f32 0.0, %v544
        %v546 = vpop.f32.mrb[0].mxu0
        %v547 = vadd.f32 0.0, %v546
        %v548 = vpop.f32.mrb[0].mxu0
        %v549 = vadd.f32 0.0, %v548
        %550 = vdwg.mxu0
        %v551 = vmul.f32 %v473, 0.25
        %v552 = vmul.f32 %v475, 0.25
        %v553 = vmul.f32 %v477, 0.25
        %v554 = vmul.f32 %v479, 0.25
        %v555 = vmul.f32 %v483, 0.25
        %v556 = vmul.f32 %v485, 0.25
        %v557 = vmul.f32 %v487, 0.25
        %v558 = vmul.f32 %v489, 0.25
        %v559 = vmul.f32 %v493, 0.25
        %v560 = vmul.f32 %v495, 0.25
        %v561 = vmul.f32 %v497, 0.25
        %v562 = vmul.f32 %v499, 0.25
        %v563 = vmul.f32 %v503, 0.25
        %v564 = vmul.f32 %v505, 0.25
        %v565 = vmul.f32 %v507, 0.25
        %v566 = vmul.f32 %v509, 0.25
        %v567 = vmul.f32 %v513, 0.25
        %v568 = vmul.f32 %v515, 0.25
        %v569 = vmul.f32 %v517, 0.25
        %v570 = vmul.f32 %v519, 0.25
        %v571 = vmul.f32 %v523, 0.25
        %v572 = vmul.f32 %v525, 0.25
        %v573 = vmul.f32 %v527, 0.25
        %v574 = vmul.f32 %v529, 0.25
        %v575 = vmul.f32 %v533, 0.25
        %v576 = vmul.f32 %v535, 0.25
        %v577 = vmul.f32 %v537, 0.25
        %v578 = vmul.f32 %v539, 0.25
        %v579 = vmul.f32 %v543, 0.25
        %v580 = vmul.f32 %v545, 0.25
        %v581 = vmul.f32 %v547, 0.25
        %v582 = vmul.f32 %v549, 0.25
        %vm583 = vcmp.gt.f32.partialorder %v551, 0.1
        %vm584 = vcmp.gt.f32.partialorder %v552, 0.1
        %vm585 = vcmp.gt.f32.partialorder %v553, 0.1
        %vm586 = vcmp.gt.f32.partialorder %v554, 0.1
        %vm587 = vcmp.gt.f32.partialorder %v555, 0.1
        %vm588 = vcmp.gt.f32.partialorder %v556, 0.1
        %vm589 = vcmp.gt.f32.partialorder %v557, 0.1
        %vm590 = vcmp.gt.f32.partialorder %v558, 0.1
        %vm591 = vcmp.gt.f32.partialorder %v559, 0.1
        %vm592 = vcmp.gt.f32.partialorder %v560, 0.1
        %vm593 = vcmp.gt.f32.partialorder %v561, 0.1
        %vm594 = vcmp.gt.f32.partialorder %v562, 0.1
        %vm595 = vcmp.gt.f32.partialorder %v563, 0.1
        %vm596 = vcmp.gt.f32.partialorder %v564, 0.1
        %vm597 = vcmp.gt.f32.partialorder %v565, 0.1
        %vm598 = vcmp.gt.f32.partialorder %v566, 0.1
        %vm599 = vcmp.gt.f32.partialorder %v567, 0.1
        %vm600 = vcmp.gt.f32.partialorder %v568, 0.1
        %vm601 = vcmp.gt.f32.partialorder %v569, 0.1
        %vm602 = vcmp.gt.f32.partialorder %v570, 0.1
        %vm603 = vcmp.gt.f32.partialorder %v571, 0.1
        %vm604 = vcmp.gt.f32.partialorder %v572, 0.1
        %vm605 = vcmp.gt.f32.partialorder %v573, 0.1
        %vm606 = vcmp.gt.f32.partialorder %v574, 0.1
        %vm607 = vcmp.gt.f32.partialorder %v575, 0.1
        %vm608 = vcmp.gt.f32.partialorder %v576, 0.1
        %vm609 = vcmp.gt.f32.partialorder %v577, 0.1
        %vm610 = vcmp.gt.f32.partialorder %v578, 0.1
        %vm611 = vcmp.gt.f32.partialorder %v579, 0.1
        %vm612 = vcmp.gt.f32.partialorder %v580, 0.1
        %vm613 = vcmp.gt.f32.partialorder %v581, 0.1
        %vm614 = vcmp.gt.f32.partialorder %v582, 0.1
        %v615 = vsel %vm583, %v551, 0.0
        %v616 = vsel %vm584, %v552, 0.0
        %v617 = vsel %vm585, %v553, 0.0
        %v618 = vsel %vm586, %v554, 0.0
        %v619 = vsel %vm587, %v555, 0.0
        %v620 = vsel %vm588, %v556, 0.0
        %v621 = vsel %vm589, %v557, 0.0
        %v622 = vsel %vm590, %v558, 0.0
        %v623 = vsel %vm591, %v559, 0.0
        %v624 = vsel %vm592, %v560, 0.0
        %v625 = vsel %vm593, %v561, 0.0
        %v626 = vsel %vm594, %v562, 0.0
        %v627 = vsel %vm595, %v563, 0.0
        %v628 = vsel %vm596, %v564, 0.0
        %v629 = vsel %vm597, %v565, 0.0
        %v630 = vsel %vm598, %v566, 0.0
        %v631 = vsel %vm599, %v567, 0.0
        %v632 = vsel %vm600, %v568, 0.0
        %v633 = vsel %vm601, %v569, 0.0
        %v634 = vsel %vm602, %v570, 0.0
        %v635 = vsel %vm603, %v571, 0.0
        %v636 = vsel %vm604, %v572, 0.0
        %v637 = vsel %vm605, %v573, 0.0
        %v638 = vsel %vm606, %v574, 0.0
        %v639 = vsel %vm607, %v575, 0.0
        %v640 = vsel %vm608, %v576, 0.0
        %v641 = vsel %vm609, %v577, 0.0
        %v642 = vsel %vm610, %v578, 0.0
        %v643 = vsel %vm611, %v579, 0.0
        %v644 = vsel %vm612, %v580, 0.0
        %v645 = vsel %vm613, %v581, 0.0
        %v646 = vsel %vm614, %v582, 0.0
        %v647 = vadd.f32 %v615, %v616
        %648 = vadd.xlane.f32.xlu0 %v647
        %v649 = vpop.xlane.xlu0 %648
        %v650 = vadd.f32 %v617, %v618
        %651 = vadd.xlane.f32.xlu0 %v650
        %v652 = vpop.xlane.xlu0 %651
        %v653 = vadd.f32 %v619, %v620
        %654 = vadd.xlane.f32.xlu0 %v653
        %v655 = vpop.xlane.xlu0 %654
        %v656 = vadd.f32 %v621, %v622
        %657 = vadd.xlane.f32.xlu0 %v656
        %v658 = vpop.xlane.xlu0 %657
        %v659 = vadd.f32 %v623, %v624
        %660 = vadd.xlane.f32.xlu0 %v659
        %v661 = vpop.xlane.xlu0 %660
        %v662 = vadd.f32 %v625, %v626
        %663 = vadd.xlane.f32.xlu0 %v662
        %v664 = vpop.xlane.xlu0 %663
        %v665 = vadd.f32 %v627, %v628
        %666 = vadd.xlane.f32.xlu0 %v665
        %v667 = vpop.xlane.xlu0 %666
        %v668 = vadd.f32 %v629, %v630
        %669 = vadd.xlane.f32.xlu0 %v668
        %v670 = vpop.xlane.xlu0 %669
        %v671 = vadd.f32 %v631, %v632
        %672 = vadd.xlane.f32.xlu0 %v671
        %v673 = vpop.xlane.xlu0 %672
        %v674 = vadd.f32 %v633, %v634
        %675 = vadd.xlane.f32.xlu0 %v674
        %v676 = vpop.xlane.xlu0 %675
        %v677 = vadd.f32 %v635, %v636
        %678 = vadd.xlane.f32.xlu0 %v677
        %v679 = vpop.xlane.xlu0 %678
        %v680 = vadd.f32 %v637, %v638
        %681 = vadd.xlane.f32.xlu0 %v680
        %v682 = vpop.xlane.xlu0 %681
        %v683 = vadd.f32 %v639, %v640
        %684 = vadd.xlane.f32.xlu0 %v683
        %v685 = vpop.xlane.xlu0 %684
        %v686 = vadd.f32 %v641, %v642
        %687 = vadd.xlane.f32.xlu0 %v686
        %v688 = vpop.xlane.xlu0 %687
        %v689 = vadd.f32 %v643, %v644
        %690 = vadd.xlane.f32.xlu0 %v689
        %v691 = vpop.xlane.xlu0 %690
        %v692 = vadd.f32 %v645, %v646
        %693 = vadd.xlane.f32.xlu0 %v692
        %v694 = vpop.xlane.xlu0 %693
        %v695 = vmax.f32 %v649, 1e-12
        %v696 = vmax.f32 %v652, 1e-12
        %v697 = vmax.f32 %v655, 1e-12
        %v698 = vmax.f32 %v658, 1e-12
        %v699 = vmax.f32 %v661, 1e-12
        %v700 = vmax.f32 %v664, 1e-12
        %v701 = vmax.f32 %v667, 1e-12
        %v702 = vmax.f32 %v670, 1e-12
        %v703 = vmax.f32 %v673, 1e-12
        %v704 = vmax.f32 %v676, 1e-12
        %v705 = vmax.f32 %v679, 1e-12
        %v706 = vmax.f32 %v682, 1e-12
        %v707 = vmax.f32 %v685, 1e-12
        %v708 = vmax.f32 %v688, 1e-12
        %v709 = vmax.f32 %v691, 1e-12
        %v710 = vmax.f32 %v694, 1e-12
        %v711 = vrcp.pop %v695
        %v712 = vrcp.pop %v696
        %v713 = vrcp.pop %v697
        %v714 = vrcp.pop %v698
        %v715 = vrcp.pop %v699
        %v716 = vrcp.pop %v700
        %v717 = vrcp.pop %v701
        %v718 = vrcp.pop %v702
        %v719 = vrcp.pop %v703
        %v720 = vrcp.pop %v704
        %v721 = vrcp.pop %v705
        %v722 = vrcp.pop %v706
        %v723 = vrcp.pop %v707
        %v724 = vrcp.pop %v708
        %v725 = vrcp.pop %v709
        %v726 = vrcp.pop %v710
        %v727 = vmul.f32 %v615, %v711
        %v728 = vmul.f32 %v616, %v711
        %v729 = vmul.f32 %v617, %v712
        %v730 = vmul.f32 %v618, %v712
        %v731 = vmul.f32 %v619, %v713
        %v732 = vmul.f32 %v620, %v713
        %v733 = vmul.f32 %v621, %v714
        %v734 = vmul.f32 %v622, %v714
        %v735 = vmul.f32 %v623, %v715
        %v736 = vmul.f32 %v624, %v715
        %v737 = vmul.f32 %v625, %v716
        %v738 = vmul.f32 %v626, %v716
        %v739 = vmul.f32 %v627, %v717
        %v740 = vmul.f32 %v628, %v717
        %v741 = vmul.f32 %v629, %v718
        %v742 = vmul.f32 %v630, %v718
        %v743 = vmul.f32 %v631, %v719
        %v744 = vmul.f32 %v632, %v719
        %v745 = vmul.f32 %v633, %v720
        %v746 = vmul.f32 %v634, %v720
        %v747 = vmul.f32 %v635, %v721
        %v748 = vmul.f32 %v636, %v721
        %v749 = vmul.f32 %v637, %v722
        %v750 = vmul.f32 %v638, %v722
        %v751 = vmul.f32 %v639, %v723
        %v752 = vmul.f32 %v640, %v723
        %v753 = vmul.f32 %v641, %v724
        %v754 = vmul.f32 %v642, %v724
        %v755 = vmul.f32 %v643, %v725
        %v756 = vmul.f32 %v644, %v725
        %v757 = vmul.f32 %v645, %v726
        %v758 = vmul.f32 %v646, %v726
        %v759 = vld [vmem:[%s214] sm:$0xff]
        %v760 = vld [vmem:[%s214 + $0x8] sm:$0xff]
        %v761 = vld [vmem:[%s214 + $0x10] sm:$0xff]
        %v762 = vld [vmem:[%s214 + $0x18] sm:$0xff]
        %v763 = vld [vmem:[%s214 + $0x20] sm:$0xff]
        %v764 = vld [vmem:[%s214 + $0x28] sm:$0xff]
        %v765 = vld [vmem:[%s214 + $0x30] sm:$0xff]
        %v766 = vld [vmem:[%s214 + $0x38] sm:$0xff]
        %v767 = vld [vmem:[%s214 + $0x40] sm:$0xff]
        %v768 = vld [vmem:[%s214 + $0x48] sm:$0xff]
        %v769 = vld [vmem:[%s214 + $0x50] sm:$0xff]
        %v770 = vld [vmem:[%s214 + $0x58] sm:$0xff]
        %v771 = vld [vmem:[%s214 + $0x60] sm:$0xff]
        %v772 = vld [vmem:[%s214 + $0x68] sm:$0xff]
        %v773 = vld [vmem:[%s214 + $0x70] sm:$0xff]
        %v774 = vld [vmem:[%s214 + $0x78] sm:$0xff]
        %v775 = vunpack.c.l.bf16 %v759
        %v776 = vunpack.c.h.bf16 %v759
        %v777 = vunpack.c.l.bf16 %v760
        %v778 = vunpack.c.h.bf16 %v760
        %v779 = vunpack.c.l.bf16 %v761
        %v780 = vunpack.c.h.bf16 %v761
        %v781 = vunpack.c.l.bf16 %v762
        %v782 = vunpack.c.h.bf16 %v762
        %v783 = vunpack.c.l.bf16 %v763
        %v784 = vunpack.c.h.bf16 %v763
        %v785 = vunpack.c.l.bf16 %v764
        %v786 = vunpack.c.h.bf16 %v764
        %v787 = vunpack.c.l.bf16 %v765
        %v788 = vunpack.c.h.bf16 %v765
        %v789 = vunpack.c.l.bf16 %v766
        %v790 = vunpack.c.h.bf16 %v766
        %v791 = vunpack.c.l.bf16 %v767
        %v792 = vunpack.c.h.bf16 %v767
        %v793 = vunpack.c.l.bf16 %v768
        %v794 = vunpack.c.h.bf16 %v768
        %v795 = vunpack.c.l.bf16 %v769
        %v796 = vunpack.c.h.bf16 %v769
        %v797 = vunpack.c.l.bf16 %v770
        %v798 = vunpack.c.h.bf16 %v770
        %v799 = vunpack.c.l.bf16 %v771
        %v800 = vunpack.c.h.bf16 %v771
        %v801 = vunpack.c.l.bf16 %v772
        %v802 = vunpack.c.h.bf16 %v772
        %v803 = vunpack.c.l.bf16 %v773
        %v804 = vunpack.c.h.bf16 %v773
        %v805 = vunpack.c.l.bf16 %v774
        %v806 = vunpack.c.h.bf16 %v774
        %v807 = vmul.f32 %v775, 0.3
        %v808 = vmul.f32 %v776, 0.3
        %v809 = vmul.f32 %v777, 0.3
        %v810 = vmul.f32 %v778, 0.3
        %v811 = vmul.f32 %v779, 0.3
        %v812 = vmul.f32 %v780, 0.3
        %v813 = vmul.f32 %v781, 0.3
        %v814 = vmul.f32 %v782, 0.3
        %v815 = vmul.f32 %v783, 0.3
        %v816 = vmul.f32 %v784, 0.3
        %v817 = vmul.f32 %v785, 0.3
        %v818 = vmul.f32 %v786, 0.3
        %v819 = vmul.f32 %v787, 0.3
        %v820 = vmul.f32 %v788, 0.3
        %v821 = vmul.f32 %v789, 0.3
        %v822 = vmul.f32 %v790, 0.3
        %v823 = vmul.f32 %v791, 0.3
        %v824 = vmul.f32 %v792, 0.3
        %v825 = vmul.f32 %v793, 0.3
        %v826 = vmul.f32 %v794, 0.3
        %v827 = vmul.f32 %v795, 0.3
        %v828 = vmul.f32 %v796, 0.3
        %v829 = vmul.f32 %v797, 0.3
        %v830 = vmul.f32 %v798, 0.3
        %v831 = vmul.f32 %v799, 0.3
        %v832 = vmul.f32 %v800, 0.3
        %v833 = vmul.f32 %v801, 0.3
        %v834 = vmul.f32 %v802, 0.3
        %v835 = vmul.f32 %v803, 0.3
        %v836 = vmul.f32 %v804, 0.3
        %v837 = vmul.f32 %v805, 0.3
        %v838 = vmul.f32 %v806, 0.3
        %v839 = vmul.f32 %v727, 0.7
        %v840 = vmul.f32 %v728, 0.7
        %v841 = vmul.f32 %v729, 0.7
        %v842 = vmul.f32 %v730, 0.7
        %v843 = vmul.f32 %v731, 0.7
        %v844 = vmul.f32 %v732, 0.7
        %v845 = vmul.f32 %v733, 0.7
        %v846 = vmul.f32 %v734, 0.7
        %v847 = vmul.f32 %v735, 0.7
        %v848 = vmul.f32 %v736, 0.7
        %v849 = vmul.f32 %v737, 0.7
        %v850 = vmul.f32 %v738, 0.7
        %v851 = vmul.f32 %v739, 0.7
        %v852 = vmul.f32 %v740, 0.7
        %v853 = vmul.f32 %v741, 0.7
        %v854 = vmul.f32 %v742, 0.7
        %v855 = vmul.f32 %v743, 0.7
        %v856 = vmul.f32 %v744, 0.7
        %v857 = vmul.f32 %v745, 0.7
        %v858 = vmul.f32 %v746, 0.7
        %v859 = vmul.f32 %v747, 0.7
        %v860 = vmul.f32 %v748, 0.7
        %v861 = vmul.f32 %v749, 0.7
        %v862 = vmul.f32 %v750, 0.7
        %v863 = vmul.f32 %v751, 0.7
        %v864 = vmul.f32 %v752, 0.7
        %v865 = vmul.f32 %v753, 0.7
        %v866 = vmul.f32 %v754, 0.7
        %v867 = vmul.f32 %v755, 0.7
        %v868 = vmul.f32 %v756, 0.7
        %v869 = vmul.f32 %v757, 0.7
        %v870 = vmul.f32 %v758, 0.7
        %v871 = vadd.f32 %v807, %v839
        %v872 = vadd.f32 %v808, %v840
        %v873 = vadd.f32 %v809, %v841
        %v874 = vadd.f32 %v810, %v842
        %v875 = vadd.f32 %v811, %v843
        %v876 = vadd.f32 %v812, %v844
        %v877 = vadd.f32 %v813, %v845
        %v878 = vadd.f32 %v814, %v846
        %v879 = vadd.f32 %v815, %v847
        %v880 = vadd.f32 %v816, %v848
        %v881 = vadd.f32 %v817, %v849
        %v882 = vadd.f32 %v818, %v850
        %v883 = vadd.f32 %v819, %v851
        %v884 = vadd.f32 %v820, %v852
        %v885 = vadd.f32 %v821, %v853
        %v886 = vadd.f32 %v822, %v854
        %v887 = vadd.f32 %v823, %v855
        %v888 = vadd.f32 %v824, %v856
        %v889 = vadd.f32 %v825, %v857
        %v890 = vadd.f32 %v826, %v858
        %v891 = vadd.f32 %v827, %v859
        %v892 = vadd.f32 %v828, %v860
        %v893 = vadd.f32 %v829, %v861
        %v894 = vadd.f32 %v830, %v862
        %v895 = vadd.f32 %v831, %v863
        %v896 = vadd.f32 %v832, %v864
        %v897 = vadd.f32 %v833, %v865
        %v898 = vadd.f32 %v834, %v866
        %v899 = vadd.f32 %v835, %v867
        %v900 = vadd.f32 %v836, %v868
        %v901 = vadd.f32 %v837, %v869
        %v902 = vadd.f32 %v838, %v870
        %903 = vst [vmem:[%s241] sm:$0xff] %v871
        %904 = vst [vmem:[%s241 + $0x8] sm:$0xff] %v872
        %905 = vst [vmem:[%s241 + $0x10] sm:$0xff] %v873
        %906 = vst [vmem:[%s241 + $0x18] sm:$0xff] %v874
        %907 = vst [vmem:[%s241 + $0x20] sm:$0xff] %v875
        %908 = vst [vmem:[%s241 + $0x28] sm:$0xff] %v876
        %909 = vst [vmem:[%s241 + $0x30] sm:$0xff] %v877
        %910 = vst [vmem:[%s241 + $0x38] sm:$0xff] %v878
        %911 = vst [vmem:[%s241 + $0x40] sm:$0xff] %v879
        %912 = vst [vmem:[%s241 + $0x48] sm:$0xff] %v880
        %913 = vst [vmem:[%s241 + $0x50] sm:$0xff] %v881
        %914 = vst [vmem:[%s241 + $0x58] sm:$0xff] %v882
        %915 = vst [vmem:[%s241 + $0x60] sm:$0xff] %v883
        %916 = vst [vmem:[%s241 + $0x68] sm:$0xff] %v884
        %917 = vst [vmem:[%s241 + $0x70] sm:$0xff] %v885
        %918 = vst [vmem:[%s241 + $0x78] sm:$0xff] %v886
        %919 = vst [vmem:[%s241 + $0x80] sm:$0xff] %v887
        %920 = vst [vmem:[%s241 + $0x88] sm:$0xff] %v888
        %921 = vst [vmem:[%s241 + $0x90] sm:$0xff] %v889
        %922 = vst [vmem:[%s241 + $0x98] sm:$0xff] %v890
        %923 = vst [vmem:[%s241 + $0xa0] sm:$0xff] %v891
        %924 = vst [vmem:[%s241 + $0xa8] sm:$0xff] %v892
        %925 = vst [vmem:[%s241 + $0xb0] sm:$0xff] %v893
        %926 = vst [vmem:[%s241 + $0xb8] sm:$0xff] %v894
        %927 = vst [vmem:[%s241 + $0xc0] sm:$0xff] %v895
        %928 = vst [vmem:[%s241 + $0xc8] sm:$0xff] %v896
        %929 = vst [vmem:[%s241 + $0xd0] sm:$0xff] %v897
        %930 = vst [vmem:[%s241 + $0xd8] sm:$0xff] %v898
        %931 = vst [vmem:[%s241 + $0xe0] sm:$0xff] %v899
        %932 = vst [vmem:[%s241 + $0xe8] sm:$0xff] %v900
        %933 = vst [vmem:[%s241 + $0xf0] sm:$0xff] %v901
        %934 = vst [vmem:[%s241 + $0xf8] sm:$0xff] %v902
        %s935 = sand.u32 %s102, 1
        %s936 = scalar_lea.sflag [#allocation4], %s935
        %s937 = sand.u32 %s102, 1
        %s938 = smul.addr %s937, 256
        %s939 = scalar_lea.vmem [#allocation8], %s938
        // Predicated region
        $region45: #{tpu_custom_call.1} parent=31 // pred_check
          %p940 = pneg %p112
        $region46: #{tpu_custom_call.1} parent=31 // pred_check_branch
          %942 = sbr.rel (%p940) target = $region48
        $region47: #{tpu_custom_call.1} parent=31 // pred_region
          %s943 = smul.u32 16, %s21
          %s945 = ssub.s32 4096, 4096
          %946 = vsyncadd %s936, %s945
          %s947 = smul.addr %s943, 2
          %s948 = smul.addr %s947, 128
          %s949 = scalar_lea.hbm %s3, %s948
          %s950 = sshll.u32 %s939, 4
          %s951 = int_to_ptr.vmem [resolvable:$true] %s950
          %956 = dma.vmem_to_hbm [thread:$0]  %s951, 4096, %s949, %s936, 256, 256, 16
        $region48: #{tpu_custom_call.1} parent=31 // pred_fallthru
          _
      $region32: #{tpu_custom_call.1} parent=5 // pred_fallthru
        _
      %p957 = scmp.le.s32.totalorder 2, %s16
      // Predicated region
      $region49: #{tpu_custom_call.1} parent=5 // pred_check
        %p958 = pneg %p957
      $region50: #{tpu_custom_call.1} parent=5 // pred_check_branch
        %960 = sbr.rel (%p958) target = $region52
      $region51: #{tpu_custom_call.1} parent=5 // pred_region
        %s961 = ssub.s32 %s16, 2
        // Predicated region
        $region53: #{tpu_custom_call.1} parent=51 // pred_check
          %p962 = pneg %p118
        $region54: #{tpu_custom_call.1} parent=51 // pred_check_branch
          %964 = sbr.rel (%p962) target = $region56
        $region55: #{tpu_custom_call.1} parent=51 // pred_region
          %s965 = sand.u32 %s103, 1
          %s966 = scalar_lea.sflag [#allocation4], %s965
          %s967 = sand.u32 %s103, 1
          %s968 = smul.addr %s967, 256
          %s969 = scalar_lea.vmem [#allocation8], %s968
          %970 = dma.done %s966, 4096
        $region56: #{tpu_custom_call.1} parent=51 // pred_fallthru
          _
      $region52: #{tpu_custom_call.1} parent=5 // pred_fallthru
        _
    $region6: #{tpu_custom_call.1} parent=1 // loop_footer
      %s20 = sadd.s32 1, %s16
    $region7: #{tpu_custom_call.1} parent=1 // loop_footer_branch
      %15 = sbr.rel target = $region3
    $region8: #{tpu_custom_call.1} parent=1 // loop_exit
      _
    %971 = vsyncpa [#allocation3], 1
    %s972 = scalar_lea.sflag [#allocation3], 1
    %973 = vsyncpa %s972, 1
    %974 = vsyncpa [#allocation6], 1
    %975 = vsyncpa [#allocation4], 1
    %s976 = scalar_lea.sflag [#allocation4], 1
    %977 = vsyncpa %s976, 1

// kernel: tpu_custom_call.1
$region0: #{tpu_custom_call.1}
  #allocation0 [shape = 'u32[]', space=smem, size = 0x4, offset = 0x4, fixed_abs, tag = 'smem constant byte address 0x4 - core index']
  #allocation1 [shape = 'u32[144,128]{1,0:T(1,128)}', space=vmem, size = 0x12000, scoped, tag = 'internal scratch']
  %s0 = inlined_call_operand.hbm [shape: bf16[256,128], index: 0, kind: input, shape index: {}]
  %s1 = inlined_call_operand.hbm [shape: bf16[256,128], index: 1, kind: input, shape index: {}]
  %s2 = inlined_call_operand.hbm [shape: bf16[256,256], index: 2, kind: input, shape index: {}]
  %s3 = inlined_call_operand.hbm [shape: f32[256,256], index: 3, kind: output, shape index: {}]
  %s4 = sld [smem:[#allocation0]]
  $region57: #{tpu_custom_call.1} parent=0
    _
  %s6 = ssub.s32 1, %s4
  %s7 = scalar_select 0, %s6, %s4
  $region1: #{tpu_custom_call.1} parent=0
    #allocation2 [shape = 'u8[65536]{0}', space=vmem, size = 0x10000, scoped, tag = 'input window, operand 0']
    #allocation3 [shape = 's32[2]{0}', space=sflag, size = 0x8, scoped, tag = 'scoped memory for tpu_custom_call.1']
    #allocation4 [shape = 's32[2]{0}', space=sflag, size = 0x8, scoped, tag = 'scoped memory for tpu_custom_call.1']
    #allocation5 [shape = 'u8[65536]{0}', space=vmem, size = 0x10000, scoped, tag = 'input window, operand 1, single buffered']
    #allocation6 [shape = 's32[1]{0}', space=sflag, size = 0x4, scoped, tag = 'scoped memory for tpu_custom_call.1']
    #allocation7 [shape = 'u8[131072]{0}', space=vmem, size = 0x20000, scoped, tag = 'input window, operand 2']
    #allocation8 [shape = 'u8[262144]{0}', space=vmem, size = 0x40000, scoped, tag = 'output window, operand 0']
    %8 = vsyncpa [#allocation3], 0
    %s9 = scalar_lea.sflag [#allocation3], 1
    %10 = vsyncpa %s9, 0
    %11 = vsyncpa [#allocation6], 0
    %12 = vsyncpa [#allocation4], 0
    %s13 = scalar_lea.sflag [#allocation4], 1
    %14 = vsyncpa %s13, 0
    loop: start=0, step=1, limit=4
    $region2: #{tpu_custom_call.1} parent=1 // loop_pre_header
      _
    $region3: #{tpu_custom_call.1} parent=1 // loop_header
      %s16 = sphi 0, %s20
      %p17 = scmp.ge.s32.totalorder %s16, 4
      %s26 = sphi 0, %s28
      %s29 = sphi 0, %s26
      %s30 = sphi 0, %s29
      %s46 = sphi 0, %s30
      %s50 = sphi 0, %s50
      %s52 = sphi 0, %s50
      %s53 = sphi 0, %s52
      %s67 = sphi 0, %s53
      %s73 = sphi 0, %s75
      %s76 = sphi 0, %s73
      %s77 = sphi 0, %s76
      %s93 = sphi 0, %s77
      %s99 = sphi 0, %s101
      %s102 = sphi 0, %s99
      %s103 = sphi 0, %s102
      %s119 = sphi 0, %s103
    $region4: #{tpu_custom_call.1} parent=1 // loop_header_branch
      %19 = sbr.rel (%p17) target = $region8
    $region5: #{tpu_custom_call.1} parent=1 // loop_body
      %s21 = ssub.s32 %s16, 1
      %s22 = ssub.s32 %s16, 2
      %s23 = sadd.s32 %s16, 1
      %s24 = ssub.s32 %s16, %s23
      %p25 = scmp.eq.s32.totalorder %s24, 0
      %s27 = sadd.s32 %s26, 1
      %s28 = scalar_select %p25, %s26, %s27
      %p31 = pneg %p25
      %p32 = scmp.eq.s32.totalorder %s16, 1
      %p33 = por %p31, %p32
      %p34 = scmp.ne.s32.totalorder %s26, %s29
      %p35 = scmp.eq.s32.totalorder %s16, 0
      %p36 = por %p34, %p35
      %p37 = scmp.ne.s32.totalorder %s26, %s29
      %p38 = scmp.eq.s32.totalorder %s21, 1
      %p39 = por %p37, %p38
      %p40 = scmp.ne.s32.totalorder %s29, %s30
      %p41 = scmp.eq.s32.totalorder %s21, 0
      %p42 = por %p40, %p41
      %p43 = scmp.ne.s32.totalorder %s29, %s30
      %p44 = scmp.eq.s32.totalorder %s22, 1
      %p45 = por %p43, %p44
      %p47 = scmp.ne.s32.totalorder %s30, %s46
      %p48 = scmp.eq.s32.totalorder %s22, 0
      %p49 = por %p47, %p48
      %s51 = sadd.s32 %s50, 1
      %p54 = scmp.eq.s32.totalorder %s16, 1
      %p55 = scmp.ne.s32.totalorder %s50, %s52
      %p56 = scmp.eq.s32.totalorder %s16, 0
      %p57 = por %p55, %p56
      %p58 = scmp.ne.s32.totalorder %s50, %s52
      %p59 = scmp.eq.s32.totalorder %s21, 1
      %p60 = por %p58, %p59
      %p61 = scmp.ne.s32.totalorder %s52, %s53
      %p62 = scmp.eq.s32.totalorder %s21, 0
      %p63 = por %p61, %p62
      %p64 = scmp.ne.s32.totalorder %s52, %s53
      %p65 = scmp.eq.s32.totalorder %s22, 1
      %p66 = por %p64, %p65
      %p68 = scmp.ne.s32.totalorder %s53, %s67
      %p69 = scmp.eq.s32.totalorder %s22, 0
      %p70 = por %p68, %p69
      %s71 = ssub.s32 %s16, %s23
      %p72 = scmp.eq.s32.totalorder %s71, 0
      %s74 = sadd.s32 %s73, 1
      %s75 = scalar_select %p72, %s73, %s74
      %p78 = pneg %p72
      %p79 = scmp.eq.s32.totalorder %s16, 1
      %p80 = por %p78, %p79
      %p81 = scmp.ne.s32.totalorder %s73, %s76
      %p82 = scmp.eq.s32.totalorder %s16, 0
      %p83 = por %p81, %p82
      %p84 = scmp.ne.s32.totalorder %s73, %s76
      %p85 = scmp.eq.s32.totalorder %s21, 1
      %p86 = por %p84, %p85
      %p87 = scmp.ne.s32.totalorder %s76, %s77
      %p88 = scmp.eq.s32.totalorder %s21, 0
      %p89 = por %p87, %p88
      %p90 = scmp.ne.s32.totalorder %s76, %s77
      %p91 = scmp.eq.s32.totalorder %s22, 1
      %p92 = por %p90, %p91
      %p94 = scmp.ne.s32.totalorder %s77, %s93
      %p95 = scmp.eq.s32.totalorder %s22, 0
      %p96 = por %p94, %p95
      %s97 = ssub.s32 %s16, %s23
      %p98 = scmp.eq.s32.totalorder %s97, 0
      %s100 = sadd.s32 %s99, 1
      %s101 = scalar_select %p98, %s99, %s100
      %p104 = pneg %p98
      %p105 = scmp.eq.s32.totalorder %s16, 1
      %p106 = por %p104, %p105
      %p107 = scmp.ne.s32.totalorder %s99, %s102
      %p108 = scmp.eq.s32.totalorder %s16, 0
      %p109 = por %p107, %p108
      %p110 = scmp.ne.s32.totalorder %s99, %s102
      %p111 = scmp.eq.s32.totalorder %s21, 1
      %p112 = por %p110, %p111
      %p113 = scmp.ne.s32.totalorder %s102, %s103
      %p114 = scmp.eq.s32.totalorder %s21, 0
      %p115 = por %p113, %p114
      %p116 = scmp.ne.s32.totalorder %s102, %s103
      %p117 = scmp.eq.s32.totalorder %s22, 1
      %p118 = por %p116, %p117
      %p120 = scmp.ne.s32.totalorder %s103, %s119
      %p121 = scmp.eq.s32.totalorder %s22, 0
      %p122 = por %p120, %p121
      %p123 = scmp.le.s32.totalorder 1, %s16
      %p124 = scmp.lt.s32.totalorder %s16, 3
      %p125 = pnand %p123, %p124
      %p126 = pneg %p125
      // Predicated region
      $region9: #{tpu_custom_call.1} parent=5 // pred_check
        _
      $region10: #{tpu_custom_call.1} parent=5 // pred_check_branch
        %128 = sbr.rel (%p125) target = $region12
      $region11: #{tpu_custom_call.1} parent=5 // pred_region
        %s129 = ssub.s32 %s16, 1
        // Predicated region
        $region13: #{tpu_custom_call.1} parent=11 // pred_check
          %p130 = pneg %p63
        $region14: #{tpu_custom_call.1} parent=11 // pred_check_branch
          %132 = sbr.rel (%p130) target = $region16
        $region15: #{tpu_custom_call.1} parent=11 // pred_region
          %s134 = ssub.s32 2048, 2048
          %135 = vsyncadd [#allocation6], %s134
          %s136 = sshll.u32 [#allocation5], 4
          %s137 = int_to_ptr.vmem [resolvable:$true] %s136
          %142 = dma.hbm_to_vmem [thread:$0]  %s1, 2048, %s137, [#allocation6], 64, 64, 4
        $region16: #{tpu_custom_call.1} parent=11 // pred_fallthru
          _
      $region12: #{tpu_custom_call.1} parent=5 // pred_fallthru
        _
      %p143 = scmp.lt.s32.totalorder %s16, 2
      // Predicated region
      $region17: #{tpu_custom_call.1} parent=5 // pred_check
        %p144 = pneg %p143
      $region18: #{tpu_custom_call.1} parent=5 // pred_check_branch
        %146 = sbr.rel (%p144) target = $region20
      $region19: #{tpu_custom_call.1} parent=5 // pred_region
        // Predicated region
        $region21: #{tpu_custom_call.1} parent=19 // pred_check
          %p147 = pneg %p36
        $region22: #{tpu_custom_call.1} parent=19 // pred_check_branch
          %149 = sbr.rel (%p147) target = $region24
        $region23: #{tpu_custom_call.1} parent=19 // pred_region
          %s150 = sand.u32 %s16, 1
          %s151 = scalar_lea.sflag [#allocation3], %s150
          %s152 = sand.u32 %s26, 1
          %s153 = smul.addr %s152, 64
          %s154 = scalar_lea.vmem [#allocation2], %s153
          %s155 = smul.u32 16, %s16
          %s157 = ssub.s32 1024, 1024
          %158 = vsyncadd %s151, %s157
          %s159 = smul.addr %s155, 64
          %s160 = scalar_lea.hbm %s0, %s159
          %s161 = sshll.u32 %s154, 4
          %s162 = int_to_ptr.vmem [resolvable:$true] %s161
          %167 = dma.hbm_to_vmem [thread:$0]  %s160, 1024, %s162, %s151, 64, 64, 4
        $region24: #{tpu_custom_call.1} parent=19 // pred_fallthru
          _
        // Predicated region
        $region25: #{tpu_custom_call.1} parent=19 // pred_check
          %p168 = pneg %p83
        $region26: #{tpu_custom_call.1} parent=19 // pred_check_branch
          %170 = sbr.rel (%p168) target = $region28
        $region27: #{tpu_custom_call.1} parent=19 // pred_region
          %s171 = sand.u32 %s16, 1
          %s172 = scalar_lea.sflag [#allocation3], %s171
          %s173 = sand.u32 %s73, 1
          %s174 = smul.addr %s173, 128
          %s175 = scalar_lea.vmem [#allocation7], %s174
          %s176 = smul.u32 16, %s16
          %s178 = ssub.s32 2048, 2048
          %179 = vsyncadd %s172, %s178
          %s180 = smul.addr %s176, 2
          %s181 = smul.addr %s180, 64
          %s182 = scalar_lea.hbm %s2, %s181
          %s183 = sshll.u32 %s175, 4
          %s184 = int_to_ptr.vmem [resolvable:$true] %s183
          %189 = dma.hbm_to_vmem [thread:$0]  %s182, 2048, %s184, %s172, 128, 128, 8
        $region28: #{tpu_custom_call.1} parent=19 // pred_fallthru
          _
      $region20: #{tpu_custom_call.1} parent=5 // pred_fallthru
        _
      %p190 = scmp.le.s32.totalorder 1, %s16
      %p191 = scmp.lt.s32.totalorder %s16, 3
      %p192 = pnand %p190, %p191
      %p193 = pneg %p192
      // Predicated region
      $region29: #{tpu_custom_call.1} parent=5 // pred_check
        _
      $region30: #{tpu_custom_call.1} parent=5 // pred_check_branch
        %195 = sbr.rel (%p192) target = $region32
      $region31: #{tpu_custom_call.1} parent=5 // pred_region
        %s196 = ssub.s32 %s16, 1
        %s197 = sand.u32 %s21, 1
        %s198 = scalar_lea.sflag [#allocation3], %s197
        %s199 = sand.u32 %s29, 1
        %s200 = smul.addr %s199, 64
        %s201 = scalar_lea.vmem [#allocation2], %s200
        // Predicated region
        $region33: #{tpu_custom_call.1} parent=31 // pred_check
          %p202 = pneg %p42
        $region34: #{tpu_custom_call.1} parent=31 // pred_check_branch
          %204 = sbr.rel (%p202) target = $region36
        $region35: #{tpu_custom_call.1} parent=31 // pred_region
          %205 = dma.done %s198, 1024
        $region36: #{tpu_custom_call.1} parent=31 // pred_fallthru
          _
        // Predicated region
        $region37: #{tpu_custom_call.1} parent=31 // pred_check
          %p206 = pneg %p63
        $region38: #{tpu_custom_call.1} parent=31 // pred_check_branch
          %208 = sbr.rel (%p206) target = $region40
        $region39: #{tpu_custom_call.1} parent=31 // pred_region
          %209 = dma.done [#allocation6], 2048
        $region40: #{tpu_custom_call.1} parent=31 // pred_fallthru
          _
        %s210 = sand.u32 %s21, 1
        %s211 = scalar_lea.sflag [#allocation3], %s210
        %s212 = sand.u32 %s76, 1
        %s213 = smul.addr %s212, 128
        %s214 = scalar_lea.vmem [#allocation7], %s213
        // Predicated region
        $region41: #{tpu_custom_call.1} parent=31 // pred_check
          %p215 = pneg %p89
        $region42: #{tpu_custom_call.1} parent=31 // pred_check_branch
          %217 = sbr.rel (%p215) target = $region44
        $region43: #{tpu_custom_call.1} parent=31 // pred_region
          %218 = dma.done %s211, 2048
        $region44: #{tpu_custom_call.1} parent=31 // pred_fallthru
          _
        %s219 = sand.u32 %s21, 1
        %s220 = scalar_lea.sflag [#allocation3], %s219
        %s221 = sand.u32 %s29, 1
        %s222 = smul.addr %s221, 64
        %s223 = scalar_lea.vmem [#allocation2], %s222
        %p224 = pneg %p42
        %p225 = pneg %p39
        %p226 = pneg %p63
        %p227 = pneg %p60
        %s228 = sand.u32 %s21, 1
        %s229 = scalar_lea.sflag [#allocation3], %s228
        %s230 = sand.u32 %s76, 1
        %s231 = smul.addr %s230, 128
        %s232 = scalar_lea.vmem [#allocation7], %s231
        %p233 = pneg %p89
        %p234 = pneg %p86
        %p235 = pneg %p115
        %p236 = pneg %p112
        %s237 = sand.u32 %s102, 1
        %s238 = scalar_lea.sflag [#allocation4], %s237
        %s239 = sand.u32 %s102, 1
        %s240 = smul.addr %s239, 256
        %s241 = scalar_lea.vmem [#allocation8], %s240
        %s242 = smul.u32 16, %s21
        %s243 = smul.u32 16, %s21
        %s244 = smul.u32 16, %s21
        %v246 = vld [vmem:[%s201] sm:$0xf]
        %v247 = vld [vmem:[%s201 + $0x4] sm:$0xf]
        %v248 = vld [vmem:[%s201 + $0x8] sm:$0xf]
        %v249 = vld [vmem:[%s201 + $0xc] sm:$0xf]
        %v250 = vld [vmem:[%s201 + $0x10] sm:$0xf]
        %v251 = vld [vmem:[%s201 + $0x14] sm:$0xf]
        %v252 = vld [vmem:[%s201 + $0x18] sm:$0xf]
        %v253 = vld [vmem:[%s201 + $0x1c] sm:$0xf]
        %v254 = vld [vmem:[%s201 + $0x20] sm:$0xf]
        %v255 = vld [vmem:[%s201 + $0x24] sm:$0xf]
        %v256 = vld [vmem:[%s201 + $0x28] sm:$0xf]
        %v257 = vld [vmem:[%s201 + $0x2c] sm:$0xf]
        %v258 = vld [vmem:[%s201 + $0x30] sm:$0xf]
        %v259 = vld [vmem:[%s201 + $0x34] sm:$0xf]
        %v260 = vld [vmem:[%s201 + $0x38] sm:$0xf]
        %v261 = vld [vmem:[%s201 + $0x3c] sm:$0xf]
        %v262 = vld [vmem:[#allocation5] sm:$0xf]
        %v263 = vld [vmem:[#allocation5 + $0x4] sm:$0xf]
        %v264 = vld [vmem:[#allocation5 + $0x8] sm:$0xf]
        %v265 = vld [vmem:[#allocation5 + $0xc] sm:$0xf]
        %v266 = vld [vmem:[#allocation5 + $0x10] sm:$0xf]
        %v267 = vld [vmem:[#allocation5 + $0x14] sm:$0xf]
        %v268 = vld [vmem:[#allocation5 + $0x18] sm:$0xf]
        %v269 = vld [vmem:[#allocation5 + $0x1c] sm:$0xf]
        %v270 = vld [vmem:[#allocation5 + $0x20] sm:$0xf]
        %v271 = vld [vmem:[#allocation5 + $0x24] sm:$0xf]
        %v272 = vld [vmem:[#allocation5 + $0x28] sm:$0xf]
        %v273 = vld [vmem:[#allocation5 + $0x2c] sm:$0xf]
        %v274 = vld [vmem:[#allocation5 + $0x30] sm:$0xf]
        %v275 = vld [vmem:[#allocation5 + $0x34] sm:$0xf]
        %v276 = vld [vmem:[#allocation5 + $0x38] sm:$0xf]
        %v277 = vld [vmem:[#allocation5 + $0x3c] sm:$0xf]
        %v278 = vld [vmem:[#allocation5 + $0x40] sm:$0xf]
        %v279 = vld [vmem:[#allocation5 + $0x44] sm:$0xf]
        %v280 = vld [vmem:[#allocation5 + $0x48] sm:$0xf]
        %v281 = vld [vmem:[#allocation5 + $0x4c] sm:$0xf]
        %v282 = vld [vmem:[#allocation5 + $0x50] sm:$0xf]
        %v283 = vld [vmem:[#allocation5 + $0x54] sm:$0xf]
        %v284 = vld [vmem:[#allocation5 + $0x58] sm:$0xf]
        %v285 = vld [vmem:[#allocation5 + $0x5c] sm:$0xf]
        %v286 = vld [vmem:[#allocation5 + $0x60] sm:$0xf]
        %v287 = vld [vmem:[#allocation5 + $0x64] sm:$0xf]
        %v288 = vld [vmem:[#allocation5 + $0x68] sm:$0xf]
        %v289 = vld [vmem:[#allocation5 + $0x6c] sm:$0xf]
        %v290 = vld [vmem:[#allocation5 + $0x70] sm:$0xf]
        %v291 = vld [vmem:[#allocation5 + $0x74] sm:$0xf]
        %v292 = vld [vmem:[#allocation5 + $0x78] sm:$0xf]
        %v293 = vld [vmem:[#allocation5 + $0x7c] sm:$0xf]
        %v310 = vunpack.c.l.b16 %v246
        %v311 = vunpack.c.l.b16 %v247
        %v312 = vunpack.c.l.b16 %v248
        %v313 = vunpack.c.l.b16 %v249
        %v314 = vunpack.c.l.b16 %v250
        %v315 = vunpack.c.l.b16 %v251
        %v316 = vunpack.c.l.b16 %v252
        %v317 = vunpack.c.l.b16 %v253
        %v318 = vunpack.c.l.b16 %v254
        %v319 = vunpack.c.l.b16 %v255
        %v320 = vunpack.c.l.b16 %v256
        %v321 = vunpack.c.l.b16 %v257
        %v322 = vunpack.c.l.b16 %v258
        %v323 = vunpack.c.l.b16 %v259
        %v324 = vunpack.c.l.b16 %v260
        %v325 = vunpack.c.l.b16 %v261
        %v326 = vpack.c.b16 %v311, %v310
        %v327 = vpack.c.b16 %v313, %v312
        %v328 = vpack.c.b16 %v315, %v314
        %v329 = vpack.c.b16 %v317, %v316
        %v330 = vpack.c.b16 %v319, %v318
        %v331 = vpack.c.b16 %v321, %v320
        %v332 = vpack.c.b16 %v323, %v322
        %v333 = vpack.c.b16 %v325, %v324
        %v374 = vunpack.c.l.b16 %v262
        %v375 = vunpack.c.l.b16 %v263
        %v376 = vunpack.c.l.b16 %v264
        %v377 = vunpack.c.l.b16 %v265
        %v378 = vunpack.c.l.b16 %v266
        %v379 = vunpack.c.l.b16 %v267
        %v380 = vunpack.c.l.b16 %v268
        %v381 = vunpack.c.l.b16 %v269
        %v382 = vunpack.c.l.b16 %v270
        %v383 = vunpack.c.l.b16 %v271
        %v384 = vunpack.c.l.b16 %v272
        %v385 = vunpack.c.l.b16 %v273
        %v386 = vunpack.c.l.b16 %v274
        %v387 = vunpack.c.l.b16 %v275
        %v388 = vunpack.c.l.b16 %v276
        %v389 = vunpack.c.l.b16 %v277
        %v390 = vunpack.c.l.b16 %v278
        %v391 = vunpack.c.l.b16 %v279
        %v392 = vunpack.c.l.b16 %v280
        %v393 = vunpack.c.l.b16 %v281
        %v394 = vunpack.c.l.b16 %v282
        %v395 = vunpack.c.l.b16 %v283
        %v396 = vunpack.c.l.b16 %v284
        %v397 = vunpack.c.l.b16 %v285
        %v398 = vunpack.c.l.b16 %v286
        %v399 = vunpack.c.l.b16 %v287
        %v400 = vunpack.c.l.b16 %v288
        %v401 = vunpack.c.l.b16 %v289
        %v402 = vunpack.c.l.b16 %v290
        %v403 = vunpack.c.l.b16 %v291
        %v404 = vunpack.c.l.b16 %v292
        %v405 = vunpack.c.l.b16 %v293
        %v406 = vpack.c.b16 %v375, %v374
        %v407 = vpack.c.b16 %v377, %v376
        %v408 = vpack.c.b16 %v379, %v378
        %v409 = vpack.c.b16 %v381, %v380
        %v410 = vpack.c.b16 %v383, %v382
        %v411 = vpack.c.b16 %v385, %v384
        %v412 = vpack.c.b16 %v387, %v386
        %v413 = vpack.c.b16 %v389, %v388
        %v414 = vpack.c.b16 %v391, %v390
        %v415 = vpack.c.b16 %v393, %v392
        %v416 = vpack.c.b16 %v395, %v394
        %v417 = vpack.c.b16 %v397, %v396
        %v418 = vpack.c.b16 %v399, %v398
        %v419 = vpack.c.b16 %v401, %v400
        %v420 = vpack.c.b16 %v403, %v402
        %v421 = vpack.c.b16 %v405, %v404
        %438 = vmatprep.subr.bf16.mxu0 0
        %439 = vmatpush1.bf16.xpose.msra.mxu0 %v406
        %440 = vmatprep.subr.bf16.mxu0 0
        %441 = vmatpush1.bf16.xpose.msra.mxu0 %v407
        %442 = vmatprep.subr.bf16.mxu0 0
        %443 = vmatpush1.bf16.xpose.msra.mxu0 %v408
        %444 = vmatprep.subr.bf16.mxu0 0
        %445 = vmatpush1.bf16.xpose.msra.mxu0 %v409
        %446 = vmatprep.subr.bf16.mxu0 0
        %447 = vmatpush1.bf16.xpose.msra.mxu0 %v410
        %448 = vmatprep.subr.bf16.mxu0 0
        %449 = vmatpush1.bf16.xpose.msra.mxu0 %v411
        %450 = vmatprep.subr.bf16.mxu0 0
        %451 = vmatpush1.bf16.xpose.msra.mxu0 %v412
        %452 = vmatprep.subr.bf16.mxu0 0
        %453 = vmatpush1.bf16.xpose.msra.mxu0 %v413
        %454 = vmatprep.subr.bf16.mxu0 0
        %455 = vmatpush1.bf16.xpose.msra.mxu0 %v414
        %456 = vmatprep.subr.bf16.mxu0 0
        %457 = vmatpush1.bf16.xpose.msra.mxu0 %v415
        %458 = vmatprep.subr.bf16.mxu0 0
        %459 = vmatpush1.bf16.xpose.msra.mxu0 %v416
        %460 = vmatprep.subr.bf16.mxu0 0
        %461 = vmatpush1.bf16.xpose.msra.mxu0 %v417
        %462 = vmatprep.subr.bf16.mxu0 0
        %463 = vmatpush1.bf16.xpose.msra.mxu0 %v418
        %464 = vmatprep.subr.bf16.mxu0 0
        %465 = vmatpush1.bf16.xpose.msra.mxu0 %v419
        %466 = vmatprep.subr.bf16.mxu0 0
        %467 = vmatpush1.bf16.xpose.msra.mxu0 %v420
        %468 = vmatprep.subr.bf16.mxu0 0
        %469 = vmatpush1.bf16.xpose.msra.mxu0 %v421
        %470 = vmatprep.mubr.bf16.mxu0 0
        %471 = vmatmul.mubr.bf16.gmra.mrb[0].mxu0 %v326
        %v472 = vpop.f32.mrb[0].mxu0
        %v473 = vadd.f32 0.0, %v472
        %v474 = vpop.f32.mrb[0].mxu0
        %v475 = vadd.f32 0.0, %v474
        %v476 = vpop.f32.mrb[0].mxu0
        %v477 = vadd.f32 0.0, %v476
        %v478 = vpop.f32.mrb[0].mxu0
        %v479 = vadd.f32 0.0, %v478
        %480 = vmatprep.mubr.bf16.mxu0 0
        %481 = vmatmul.mubr.bf16.gmra.mrb[0].mxu0 %v327
        %v482 = vpop.f32.mrb[0].mxu0
        %v483 = vadd.f32 0.0, %v482
        %v484 = vpop.f32.mrb[0].mxu0
        %v485 = vadd.f32 0.0, %v484
        %v486 = vpop.f32.mrb[0].mxu0
        %v487 = vadd.f32 0.0, %v486
        %v488 = vpop.f32.mrb[0].mxu0
        %v489 = vadd.f32 0.0, %v488
        %490 = vmatprep.mubr.bf16.mxu0 0
        %491 = vmatmul.mubr.bf16.gmra.mrb[0].mxu0 %v328
        %v492 = vpop.f32.mrb[0].mxu0
        %v493 = vadd.f32 0.0, %v492
        %v494 = vpop.f32.mrb[0].mxu0
        %v495 = vadd.f32 0.0, %v494
        %v496 = vpop.f32.mrb[0].mxu0
        %v497 = vadd.f32 0.0, %v496
        %v498 = vpop.f32.mrb[0].mxu0
        %v499 = vadd.f32 0.0, %v498
        %500 = vmatprep.mubr.bf16.mxu0 0
        %501 = vmatmul.mubr.bf16.gmra.mrb[0].mxu0 %v329
        %v502 = vpop.f32.mrb[0].mxu0
        %v503 = vadd.f32 0.0, %v502
        %v504 = vpop.f32.mrb[0].mxu0
        %v505 = vadd.f32 0.0, %v504
        %v506 = vpop.f32.mrb[0].mxu0
        %v507 = vadd.f32 0.0, %v506
        %v508 = vpop.f32.mrb[0].mxu0
        %v509 = vadd.f32 0.0, %v508
        %510 = vmatprep.mubr.bf16.mxu0 0
        %511 = vmatmul.mubr.bf16.gmra.mrb[0].mxu0 %v330
        %v512 = vpop.f32.mrb[0].mxu0
        %v513 = vadd.f32 0.0, %v512
        %v514 = vpop.f32.mrb[0].mxu0
        %v515 = vadd.f32 0.0, %v514
        %v516 = vpop.f32.mrb[0].mxu0
        %v517 = vadd.f32 0.0, %v516
        %v518 = vpop.f32.mrb[0].mxu0
        %v519 = vadd.f32 0.0, %v518
        %520 = vmatprep.mubr.bf16.mxu0 0
        %521 = vmatmul.mubr.bf16.gmra.mrb[0].mxu0 %v331
        %v522 = vpop.f32.mrb[0].mxu0
        %v523 = vadd.f32 0.0, %v522
        %v524 = vpop.f32.mrb[0].mxu0
        %v525 = vadd.f32 0.0, %v524
        %v526 = vpop.f32.mrb[0].mxu0
        %v527 = vadd.f32 0.0, %v526
        %v528 = vpop.f32.mrb[0].mxu0
        %v529 = vadd.f32 0.0, %v528
        %530 = vmatprep.mubr.bf16.mxu0 0
        %531 = vmatmul.mubr.bf16.gmra.mrb[0].mxu0 %v332
        %v532 = vpop.f32.mrb[0].mxu0
        %v533 = vadd.f32 0.0, %v532
        %v534 = vpop.f32.mrb[0].mxu0
        %v535 = vadd.f32 0.0, %v534
        %v536 = vpop.f32.mrb[0].mxu0
        %v537 = vadd.f32 0.0, %v536
        %v538 = vpop.f32.mrb[0].mxu0
        %v539 = vadd.f32 0.0, %v538
        %540 = vmatprep.mubr.bf16.mxu0 0
        %541 = vmatmul.mubr.bf16.gmra.mrb[0].mxu0 %v333
        %v542 = vpop.f32.mrb[0].mxu0
        %v543 = vadd.f32 0.0, %v542
        %v544 = vpop.f32.mrb[0].mxu0
        %v545 = vadd.f32 0.0, %v544
        %v546 = vpop.f32.mrb[0].mxu0
        %v547 = vadd.f32 0.0, %v546
        %v548 = vpop.f32.mrb[0].mxu0
        %v549 = vadd.f32 0.0, %v548
        %550 = vdwg.mxu0
        %v551 = vmul.f32 %v473, 0.25
        %v552 = vmul.f32 %v475, 0.25
        %v553 = vmul.f32 %v477, 0.25
        %v554 = vmul.f32 %v479, 0.25
        %v555 = vmul.f32 %v483, 0.25
        %v556 = vmul.f32 %v485, 0.25
        %v557 = vmul.f32 %v487, 0.25
        %v558 = vmul.f32 %v489, 0.25
        %v559 = vmul.f32 %v493, 0.25
        %v560 = vmul.f32 %v495, 0.25
        %v561 = vmul.f32 %v497, 0.25
        %v562 = vmul.f32 %v499, 0.25
        %v563 = vmul.f32 %v503, 0.25
        %v564 = vmul.f32 %v505, 0.25
        %v565 = vmul.f32 %v507, 0.25
        %v566 = vmul.f32 %v509, 0.25
        %v567 = vmul.f32 %v513, 0.25
        %v568 = vmul.f32 %v515, 0.25
        %v569 = vmul.f32 %v517, 0.25
        %v570 = vmul.f32 %v519, 0.25
        %v571 = vmul.f32 %v523, 0.25
        %v572 = vmul.f32 %v525, 0.25
        %v573 = vmul.f32 %v527, 0.25
        %v574 = vmul.f32 %v529, 0.25
        %v575 = vmul.f32 %v533, 0.25
        %v576 = vmul.f32 %v535, 0.25
        %v577 = vmul.f32 %v537, 0.25
        %v578 = vmul.f32 %v539, 0.25
        %v579 = vmul.f32 %v543, 0.25
        %v580 = vmul.f32 %v545, 0.25
        %v581 = vmul.f32 %v547, 0.25
        %v582 = vmul.f32 %v549, 0.25
        %vm583 = vcmp.gt.f32.partialorder %v551, 0.1
        %vm584 = vcmp.gt.f32.partialorder %v552, 0.1
        %vm585 = vcmp.gt.f32.partialorder %v553, 0.1
        %vm586 = vcmp.gt.f32.partialorder %v554, 0.1
        %vm587 = vcmp.gt.f32.partialorder %v555, 0.1
        %vm588 = vcmp.gt.f32.partialorder %v556, 0.1
        %vm589 = vcmp.gt.f32.partialorder %v557, 0.1
        %vm590 = vcmp.gt.f32.partialorder %v558, 0.1
        %vm591 = vcmp.gt.f32.partialorder %v559, 0.1
        %vm592 = vcmp.gt.f32.partialorder %v560, 0.1
        %vm593 = vcmp.gt.f32.partialorder %v561, 0.1
        %vm594 = vcmp.gt.f32.partialorder %v562, 0.1
        %vm595 = vcmp.gt.f32.partialorder %v563, 0.1
        %vm596 = vcmp.gt.f32.partialorder %v564, 0.1
        %vm597 = vcmp.gt.f32.partialorder %v565, 0.1
        %vm598 = vcmp.gt.f32.partialorder %v566, 0.1
        %vm599 = vcmp.gt.f32.partialorder %v567, 0.1
        %vm600 = vcmp.gt.f32.partialorder %v568, 0.1
        %vm601 = vcmp.gt.f32.partialorder %v569, 0.1
        %vm602 = vcmp.gt.f32.partialorder %v570, 0.1
        %vm603 = vcmp.gt.f32.partialorder %v571, 0.1
        %vm604 = vcmp.gt.f32.partialorder %v572, 0.1
        %vm605 = vcmp.gt.f32.partialorder %v573, 0.1
        %vm606 = vcmp.gt.f32.partialorder %v574, 0.1
        %vm607 = vcmp.gt.f32.partialorder %v575, 0.1
        %vm608 = vcmp.gt.f32.partialorder %v576, 0.1
        %vm609 = vcmp.gt.f32.partialorder %v577, 0.1
        %vm610 = vcmp.gt.f32.partialorder %v578, 0.1
        %vm611 = vcmp.gt.f32.partialorder %v579, 0.1
        %vm612 = vcmp.gt.f32.partialorder %v580, 0.1
        %vm613 = vcmp.gt.f32.partialorder %v581, 0.1
        %vm614 = vcmp.gt.f32.partialorder %v582, 0.1
        %v615 = vsel %vm583, %v551, 0.0
        %v616 = vsel %vm584, %v552, 0.0
        %v617 = vsel %vm585, %v553, 0.0
        %v618 = vsel %vm586, %v554, 0.0
        %v619 = vsel %vm587, %v555, 0.0
        %v620 = vsel %vm588, %v556, 0.0
        %v621 = vsel %vm589, %v557, 0.0
        %v622 = vsel %vm590, %v558, 0.0
        %v623 = vsel %vm591, %v559, 0.0
        %v624 = vsel %vm592, %v560, 0.0
        %v625 = vsel %vm593, %v561, 0.0
        %v626 = vsel %vm594, %v562, 0.0
        %v627 = vsel %vm595, %v563, 0.0
        %v628 = vsel %vm596, %v564, 0.0
        %v629 = vsel %vm597, %v565, 0.0
        %v630 = vsel %vm598, %v566, 0.0
        %v631 = vsel %vm599, %v567, 0.0
        %v632 = vsel %vm600, %v568, 0.0
        %v633 = vsel %vm601, %v569, 0.0
        %v634 = vsel %vm602, %v570, 0.0
        %v635 = vsel %vm603, %v571, 0.0
        %v636 = vsel %vm604, %v572, 0.0
        %v637 = vsel %vm605, %v573, 0.0
        %v638 = vsel %vm606, %v574, 0.0
        %v639 = vsel %vm607, %v575, 0.0
        %v640 = vsel %vm608, %v576, 0.0
        %v641 = vsel %vm609, %v577, 0.0
        %v642 = vsel %vm610, %v578, 0.0
        %v643 = vsel %vm611, %v579, 0.0
        %v644 = vsel %vm612, %v580, 0.0
        %v645 = vsel %vm613, %v581, 0.0
        %v646 = vsel %vm614, %v582, 0.0
        %v647 = vadd.f32 %v615, %v616
        %648 = vadd.xlane.f32.xlu0 %v647
        %v649 = vpop.xlane.xlu0 %648
        %v650 = vadd.f32 %v617, %v618
        %651 = vadd.xlane.f32.xlu0 %v650
        %v652 = vpop.xlane.xlu0 %651
        %v653 = vadd.f32 %v619, %v620
        %654 = vadd.xlane.f32.xlu0 %v653
        %v655 = vpop.xlane.xlu0 %654
        %v656 = vadd.f32 %v621, %v622
        %657 = vadd.xlane.f32.xlu0 %v656
        %v658 = vpop.xlane.xlu0 %657
        %v659 = vadd.f32 %v623, %v624
        %660 = vadd.xlane.f32.xlu0 %v659
        %v661 = vpop.xlane.xlu0 %660
        %v662 = vadd.f32 %v625, %v626
        %663 = vadd.xlane.f32.xlu0 %v662
        %v664 = vpop.xlane.xlu0 %663
        %v665 = vadd.f32 %v627, %v628
        %666 = vadd.xlane.f32.xlu0 %v665
        %v667 = vpop.xlane.xlu0 %666
        %v668 = vadd.f32 %v629, %v630
        %669 = vadd.xlane.f32.xlu0 %v668
        %v670 = vpop.xlane.xlu0 %669
        %v671 = vadd.f32 %v631, %v632
        %672 = vadd.xlane.f32.xlu0 %v671
        %v673 = vpop.xlane.xlu0 %672
        %v674 = vadd.f32 %v633, %v634
        %675 = vadd.xlane.f32.xlu0 %v674
        %v676 = vpop.xlane.xlu0 %675
        %v677 = vadd.f32 %v635, %v636
        %678 = vadd.xlane.f32.xlu0 %v677
        %v679 = vpop.xlane.xlu0 %678
        %v680 = vadd.f32 %v637, %v638
        %681 = vadd.xlane.f32.xlu0 %v680
        %v682 = vpop.xlane.xlu0 %681
        %v683 = vadd.f32 %v639, %v640
        %684 = vadd.xlane.f32.xlu0 %v683
        %v685 = vpop.xlane.xlu0 %684
        %v686 = vadd.f32 %v641, %v642
        %687 = vadd.xlane.f32.xlu0 %v686
        %v688 = vpop.xlane.xlu0 %687
        %v689 = vadd.f32 %v643, %v644
        %690 = vadd.xlane.f32.xlu0 %v689
        %v691 = vpop.xlane.xlu0 %690
        %v692 = vadd.f32 %v645, %v646
        %693 = vadd.xlane.f32.xlu0 %v692
        %v694 = vpop.xlane.xlu0 %693
        %v695 = vmax.f32 %v649, 1e-12
        %v696 = vmax.f32 %v652, 1e-12
        %v697 = vmax.f32 %v655, 1e-12
        %v698 = vmax.f32 %v658, 1e-12
        %v699 = vmax.f32 %v661, 1e-12
        %v700 = vmax.f32 %v664, 1e-12
        %v701 = vmax.f32 %v667, 1e-12
        %v702 = vmax.f32 %v670, 1e-12
        %v703 = vmax.f32 %v673, 1e-12
        %v704 = vmax.f32 %v676, 1e-12
        %v705 = vmax.f32 %v679, 1e-12
        %v706 = vmax.f32 %v682, 1e-12
        %v707 = vmax.f32 %v685, 1e-12
        %v708 = vmax.f32 %v688, 1e-12
        %v709 = vmax.f32 %v691, 1e-12
        %v710 = vmax.f32 %v694, 1e-12
        %v711 = vrcp.pop %v695
        %v712 = vrcp.pop %v696
        %v713 = vrcp.pop %v697
        %v714 = vrcp.pop %v698
        %v715 = vrcp.pop %v699
        %v716 = vrcp.pop %v700
        %v717 = vrcp.pop %v701
        %v718 = vrcp.pop %v702
        %v719 = vrcp.pop %v703
        %v720 = vrcp.pop %v704
        %v721 = vrcp.pop %v705
        %v722 = vrcp.pop %v706
        %v723 = vrcp.pop %v707
        %v724 = vrcp.pop %v708
        %v725 = vrcp.pop %v709
        %v726 = vrcp.pop %v710
        %v727 = vmul.f32 %v615, %v711
        %v728 = vmul.f32 %v616, %v711
        %v729 = vmul.f32 %v617, %v712
        %v730 = vmul.f32 %v618, %v712
        %v731 = vmul.f32 %v619, %v713
        %v732 = vmul.f32 %v620, %v713
        %v733 = vmul.f32 %v621, %v714
        %v734 = vmul.f32 %v622, %v714
        %v735 = vmul.f32 %v623, %v715
        %v736 = vmul.f32 %v624, %v715
        %v737 = vmul.f32 %v625, %v716
        %v738 = vmul.f32 %v626, %v716
        %v739 = vmul.f32 %v627, %v717
        %v740 = vmul.f32 %v628, %v717
        %v741 = vmul.f32 %v629, %v718
        %v742 = vmul.f32 %v630, %v718
        %v743 = vmul.f32 %v631, %v719
        %v744 = vmul.f32 %v632, %v719
        %v745 = vmul.f32 %v633, %v720
        %v746 = vmul.f32 %v634, %v720
        %v747 = vmul.f32 %v635, %v721
        %v748 = vmul.f32 %v636, %v721
        %v749 = vmul.f32 %v637, %v722
        %v750 = vmul.f32 %v638, %v722
        %v751 = vmul.f32 %v639, %v723
        %v752 = vmul.f32 %v640, %v723
        %v753 = vmul.f32 %v641, %v724
        %v754 = vmul.f32 %v642, %v724
        %v755 = vmul.f32 %v643, %v725
        %v756 = vmul.f32 %v644, %v725
        %v757 = vmul.f32 %v645, %v726
        %v758 = vmul.f32 %v646, %v726
        %v759 = vld [vmem:[%s214] sm:$0xff]
        %v760 = vld [vmem:[%s214 + $0x8] sm:$0xff]
        %v761 = vld [vmem:[%s214 + $0x10] sm:$0xff]
        %v762 = vld [vmem:[%s214 + $0x18] sm:$0xff]
        %v763 = vld [vmem:[%s214 + $0x20] sm:$0xff]
        %v764 = vld [vmem:[%s214 + $0x28] sm:$0xff]
        %v765 = vld [vmem:[%s214 + $0x30] sm:$0xff]
        %v766 = vld [vmem:[%s214 + $0x38] sm:$0xff]
        %v767 = vld [vmem:[%s214 + $0x40] sm:$0xff]
        %v768 = vld [vmem:[%s214 + $0x48] sm:$0xff]
        %v769 = vld [vmem:[%s214 + $0x50] sm:$0xff]
        %v770 = vld [vmem:[%s214 + $0x58] sm:$0xff]
        %v771 = vld [vmem:[%s214 + $0x60] sm:$0xff]
        %v772 = vld [vmem:[%s214 + $0x68] sm:$0xff]
        %v773 = vld [vmem:[%s214 + $0x70] sm:$0xff]
        %v774 = vld [vmem:[%s214 + $0x78] sm:$0xff]
        %v775 = vunpack.c.l.bf16 %v759
        %v776 = vunpack.c.h.bf16 %v759
        %v777 = vunpack.c.l.bf16 %v760
        %v778 = vunpack.c.h.bf16 %v760
        %v779 = vunpack.c.l.bf16 %v761
        %v780 = vunpack.c.h.bf16 %v761
        %v781 = vunpack.c.l.bf16 %v762
        %v782 = vunpack.c.h.bf16 %v762
        %v783 = vunpack.c.l.bf16 %v763
        %v784 = vunpack.c.h.bf16 %v763
        %v785 = vunpack.c.l.bf16 %v764
        %v786 = vunpack.c.h.bf16 %v764
        %v787 = vunpack.c.l.bf16 %v765
        %v788 = vunpack.c.h.bf16 %v765
        %v789 = vunpack.c.l.bf16 %v766
        %v790 = vunpack.c.h.bf16 %v766
        %v791 = vunpack.c.l.bf16 %v767
        %v792 = vunpack.c.h.bf16 %v767
        %v793 = vunpack.c.l.bf16 %v768
        %v794 = vunpack.c.h.bf16 %v768
        %v795 = vunpack.c.l.bf16 %v769
        %v796 = vunpack.c.h.bf16 %v769
        %v797 = vunpack.c.l.bf16 %v770
        %v798 = vunpack.c.h.bf16 %v770
        %v799 = vunpack.c.l.bf16 %v771
        %v800 = vunpack.c.h.bf16 %v771
        %v801 = vunpack.c.l.bf16 %v772
        %v802 = vunpack.c.h.bf16 %v772
        %v803 = vunpack.c.l.bf16 %v773
        %v804 = vunpack.c.h.bf16 %v773
        %v805 = vunpack.c.l.bf16 %v774
        %v806 = vunpack.c.h.bf16 %v774
        %v807 = vmul.f32 %v775, 0.3
        %v808 = vmul.f32 %v776, 0.3
        %v809 = vmul.f32 %v777, 0.3
        %v810 = vmul.f32 %v778, 0.3
        %v811 = vmul.f32 %v779, 0.3
        %v812 = vmul.f32 %v780, 0.3
        %v813 = vmul.f32 %v781, 0.3
        %v814 = vmul.f32 %v782, 0.3
        %v815 = vmul.f32 %v783, 0.3
        %v816 = vmul.f32 %v784, 0.3
        %v817 = vmul.f32 %v785, 0.3
        %v818 = vmul.f32 %v786, 0.3
        %v819 = vmul.f32 %v787, 0.3
        %v820 = vmul.f32 %v788, 0.3
        %v821 = vmul.f32 %v789, 0.3
        %v822 = vmul.f32 %v790, 0.3
        %v823 = vmul.f32 %v791, 0.3
        %v824 = vmul.f32 %v792, 0.3
        %v825 = vmul.f32 %v793, 0.3
        %v826 = vmul.f32 %v794, 0.3
        %v827 = vmul.f32 %v795, 0.3
        %v828 = vmul.f32 %v796, 0.3
        %v829 = vmul.f32 %v797, 0.3
        %v830 = vmul.f32 %v798, 0.3
        %v831 = vmul.f32 %v799, 0.3
        %v832 = vmul.f32 %v800, 0.3
        %v833 = vmul.f32 %v801, 0.3
        %v834 = vmul.f32 %v802, 0.3
        %v835 = vmul.f32 %v803, 0.3
        %v836 = vmul.f32 %v804, 0.3
        %v837 = vmul.f32 %v805, 0.3
        %v838 = vmul.f32 %v806, 0.3
        %v839 = vmul.f32 %v727, 0.7
        %v840 = vmul.f32 %v728, 0.7
        %v841 = vmul.f32 %v729, 0.7
        %v842 = vmul.f32 %v730, 0.7
        %v843 = vmul.f32 %v731, 0.7
        %v844 = vmul.f32 %v732, 0.7
        %v845 = vmul.f32 %v733, 0.7
        %v846 = vmul.f32 %v734, 0.7
        %v847 = vmul.f32 %v735, 0.7
        %v848 = vmul.f32 %v736, 0.7
        %v849 = vmul.f32 %v737, 0.7
        %v850 = vmul.f32 %v738, 0.7
        %v851 = vmul.f32 %v739, 0.7
        %v852 = vmul.f32 %v740, 0.7
        %v853 = vmul.f32 %v741, 0.7
        %v854 = vmul.f32 %v742, 0.7
        %v855 = vmul.f32 %v743, 0.7
        %v856 = vmul.f32 %v744, 0.7
        %v857 = vmul.f32 %v745, 0.7
        %v858 = vmul.f32 %v746, 0.7
        %v859 = vmul.f32 %v747, 0.7
        %v860 = vmul.f32 %v748, 0.7
        %v861 = vmul.f32 %v749, 0.7
        %v862 = vmul.f32 %v750, 0.7
        %v863 = vmul.f32 %v751, 0.7
        %v864 = vmul.f32 %v752, 0.7
        %v865 = vmul.f32 %v753, 0.7
        %v866 = vmul.f32 %v754, 0.7
        %v867 = vmul.f32 %v755, 0.7
        %v868 = vmul.f32 %v756, 0.7
        %v869 = vmul.f32 %v757, 0.7
        %v870 = vmul.f32 %v758, 0.7
        %v871 = vadd.f32 %v807, %v839
        %v872 = vadd.f32 %v808, %v840
        %v873 = vadd.f32 %v809, %v841
        %v874 = vadd.f32 %v810, %v842
        %v875 = vadd.f32 %v811, %v843
        %v876 = vadd.f32 %v812, %v844
        %v877 = vadd.f32 %v813, %v845
        %v878 = vadd.f32 %v814, %v846
        %v879 = vadd.f32 %v815, %v847
        %v880 = vadd.f32 %v816, %v848
        %v881 = vadd.f32 %v817, %v849
        %v882 = vadd.f32 %v818, %v850
        %v883 = vadd.f32 %v819, %v851
        %v884 = vadd.f32 %v820, %v852
        %v885 = vadd.f32 %v821, %v853
        %v886 = vadd.f32 %v822, %v854
        %v887 = vadd.f32 %v823, %v855
        %v888 = vadd.f32 %v824, %v856
        %v889 = vadd.f32 %v825, %v857
        %v890 = vadd.f32 %v826, %v858
        %v891 = vadd.f32 %v827, %v859
        %v892 = vadd.f32 %v828, %v860
        %v893 = vadd.f32 %v829, %v861
        %v894 = vadd.f32 %v830, %v862
        %v895 = vadd.f32 %v831, %v863
        %v896 = vadd.f32 %v832, %v864
        %v897 = vadd.f32 %v833, %v865
        %v898 = vadd.f32 %v834, %v866
        %v899 = vadd.f32 %v835, %v867
        %v900 = vadd.f32 %v836, %v868
        %v901 = vadd.f32 %v837, %v869
        %v902 = vadd.f32 %v838, %v870
        %903 = vst [vmem:[%s241] sm:$0xff] %v871
        %904 = vst [vmem:[%s241 + $0x8] sm:$0xff] %v872
        %905 = vst [vmem:[%s241 + $0x10] sm:$0xff] %v873
        %906 = vst [vmem:[%s241 + $0x18] sm:$0xff] %v874
        %907 = vst [vmem:[%s241 + $0x20] sm:$0xff] %v875
        %908 = vst [vmem:[%s241 + $0x28] sm:$0xff] %v876
        %909 = vst [vmem:[%s241 + $0x30] sm:$0xff] %v877
        %910 = vst [vmem:[%s241 + $0x38] sm:$0xff] %v878
        %911 = vst [vmem:[%s241 + $0x40] sm:$0xff] %v879
        %912 = vst [vmem:[%s241 + $0x48] sm:$0xff] %v880
        %913 = vst [vmem:[%s241 + $0x50] sm:$0xff] %v881
        %914 = vst [vmem:[%s241 + $0x58] sm:$0xff] %v882
        %915 = vst [vmem:[%s241 + $0x60] sm:$0xff] %v883
        %916 = vst [vmem:[%s241 + $0x68] sm:$0xff] %v884
        %917 = vst [vmem:[%s241 + $0x70] sm:$0xff] %v885
        %918 = vst [vmem:[%s241 + $0x78] sm:$0xff] %v886
        %919 = vst [vmem:[%s241 + $0x80] sm:$0xff] %v887
        %920 = vst [vmem:[%s241 + $0x88] sm:$0xff] %v888
        %921 = vst [vmem:[%s241 + $0x90] sm:$0xff] %v889
        %922 = vst [vmem:[%s241 + $0x98] sm:$0xff] %v890
        %923 = vst [vmem:[%s241 + $0xa0] sm:$0xff] %v891
        %924 = vst [vmem:[%s241 + $0xa8] sm:$0xff] %v892
        %925 = vst [vmem:[%s241 + $0xb0] sm:$0xff] %v893
        %926 = vst [vmem:[%s241 + $0xb8] sm:$0xff] %v894
        %927 = vst [vmem:[%s241 + $0xc0] sm:$0xff] %v895
        %928 = vst [vmem:[%s241 + $0xc8] sm:$0xff] %v896
        %929 = vst [vmem:[%s241 + $0xd0] sm:$0xff] %v897
        %930 = vst [vmem:[%s241 + $0xd8] sm:$0xff] %v898
        %931 = vst [vmem:[%s241 + $0xe0] sm:$0xff] %v899
        %932 = vst [vmem:[%s241 + $0xe8] sm:$0xff] %v900
        %933 = vst [vmem:[%s241 + $0xf0] sm:$0xff] %v901
        %934 = vst [vmem:[%s241 + $0xf8] sm:$0xff] %v902
        %s935 = sand.u32 %s102, 1
        %s936 = scalar_lea.sflag [#allocation4], %s935
        %s937 = sand.u32 %s102, 1
        %s938 = smul.addr %s937, 256
        %s939 = scalar_lea.vmem [#allocation8], %s938
        // Predicated region
        $region45: #{tpu_custom_call.1} parent=31 // pred_check
          %p940 = pneg %p112
        $region46: #{tpu_custom_call.1} parent=31 // pred_check_branch
          %942 = sbr.rel (%p940) target = $region48
        $region47: #{tpu_custom_call.1} parent=31 // pred_region
          %s943 = smul.u32 16, %s21
          %s945 = ssub.s32 4096, 4096
          %946 = vsyncadd %s936, %s945
          %s947 = smul.addr %s943, 2
          %s948 = smul.addr %s947, 128
          %s949 = scalar_lea.hbm %s3, %s948
          %s950 = sshll.u32 %s939, 4
          %s951 = int_to_ptr.vmem [resolvable:$true] %s950
          %956 = dma.vmem_to_hbm [thread:$0]  %s951, 4096, %s949, %s936, 256, 256, 16
        $region48: #{tpu_custom_call.1} parent=31 // pred_fallthru
          _
      $region32: #{tpu_custom_call.1} parent=5 // pred_fallthru
        _
      %p957 = scmp.le.s32.totalorder 2, %s16
      // Predicated region
      $region49: #{tpu_custom_call.1} parent=5 // pred_check
        %p958 = pneg %p957
      $region50: #{tpu_custom_call.1} parent=5 // pred_check_branch
        %960 = sbr.rel (%p958) target = $region52
      $region51: #{tpu_custom_call.1} parent=5 // pred_region
        %s961 = ssub.s32 %s16, 2
        // Predicated region
        $region53: #{tpu_custom_call.1} parent=51 // pred_check
          %p962 = pneg %p118
        $region54: #{tpu_custom_call.1} parent=51 // pred_check_branch
          %964 = sbr.rel (%p962) target = $region56
        $region55: #{tpu_custom_call.1} parent=51 // pred_region
          %s965 = sand.u32 %s103, 1
          %s966 = scalar_lea.sflag [#allocation4], %s965
          %s967 = sand.u32 %s103, 1
          %s968 = smul.addr %s967, 256
          %s969 = scalar_lea.vmem [#allocation8], %s968
          %970 = dma.done %s966, 4096
        $region56: #{tpu_custom_call.1} parent=51 // pred_fallthru
          _
      $region52: #{tpu_custom_call.1} parent=5 // pred_fallthru
        _
    $region6: #{tpu_custom_call.1} parent=1 // loop_footer
      %s20 = sadd.s32 1, %s16
    $region7: #{tpu_custom_call.1} parent=1 // loop_footer_branch
      %15 = sbr.rel target = $region3
    $region8: #{tpu_custom_call.1} parent=1 // loop_exit
      _
    %971 = vsyncpa [#allocation3], 1
    %s972 = scalar_lea.sflag [#allocation3], 1
    %973 = vsyncpa %s972, 1
    %974 = vsyncpa [#allocation6], 1
    %975 = vsyncpa [#allocation4], 1
    %s976 = scalar_lea.sflag [#allocation4], 1
    %977 = vsyncpa %s976, 1

</llo_original>
